<compile_context>
chip_gen: v6e
topology: v6e:2x2x1
jax: 0.10.0
libtpu: 0.0.40
codegen_flags: <defaults>
</compile_context>

<pallas_src>
import functools
from collections import namedtuple

import numpy as np

import jax
import jax.numpy as jnp
from jax.experimental import pallas as pl
from jax.experimental.pallas import tpu as pltpu

BN_EPS = 1e-5
DILATIONS = (1, 2, 4, 8, 16)
MID_PAD = 8                      # pad per-branch mid channels to a full sublane tile

# ----- ESPStage configuration (small, consistent with the module) -----
X_CHANNELS = 4
Y_IN_CHANNELS = 8
Y_OUT_CHANNELS = 24
LAYERS = 2                       # 1 downsample ESPBlock + 1 residual ESPBlock
BATCH = 2
SPATIAL = 16

EspStageConfig = namedtuple("EspStageConfig",
                            ["shifts", "full", "n_blocks", "p", "oc", "cx"])


# ======================= static geometry (numpy, host, once) =======================

def _surviving_taps(oh, ow):
    """Taps of the 5 dilated 3x3 convs that have at least one valid output."""
    taps = []
    for b, d in enumerate(DILATIONS):
        for t in range(9):
            dh = (t // 3 - 1) * d
            dw = (t % 3 - 1) * d
            if abs(dh) < oh and abs(dw) < ow:
                taps.append((b, t, dh, dw))
    return tuple(taps)


def _tap_masks_shifts(n, oh, ow, taps):
    """Per-tap lane shift (for pltpu.roll) and 0/1 validity mask over P=n*oh*ow."""
    p = n * oh * ow
    masks = np.zeros((len(taps), 1, p), np.float32)
    shifts, full = [], []
    for i, (_, _, dh, dw) in enumerate(taps):
        m = np.zeros((oh, ow), np.float32)
        m[max(0, -dh):min(oh, oh - dh), max(0, -dw):min(ow, ow - dw)] = 1.0
        masks[i, 0, :] = np.tile(m.reshape(-1), n)
        shifts.append(int((-(dh * ow + dw)) % p))   # out[p] = in[p + dh*ow + dw]
        full.append(bool(m.all()))
    return masks, tuple(shifts), tuple(full)


def _hier_matrix(oc_list):
    """Prefix-sum of HierarchicalConcurrent(exclude_first=True):
    out_0 = raw_0, out_1 = raw_1, out_i = raw_1 + ... + raw_i (i >= 2)."""
    offs = np.concatenate([[0], np.cumsum(oc_list)]).astype(int)
    total = int(offs[-1])
    m = np.zeros((total, total), np.float32)
    for i, oci in enumerate(oc_list):
        srcs = [0] if i == 0 else list(range(1, i + 1))
        for j in srcs:
            m[offs[i]:offs[i] + oci, offs[j]:offs[j] + oci] += np.eye(oci, dtype=np.float32)
    return m, offs, total


def _branch_big_weight(branch_w, taps):
    """(OC_total, T*MID_PAD): per-tap branch weights with hierarchical prefix-sum,
    branch row placement and tap selection pre-folded; each tap's column block is
    zero-padded mid -> MID_PAD so the in-kernel stack stays 8-sublane aligned."""
    oc_list = [w.shape[0] for w in branch_w]
    mid = branch_w[0].shape[1]
    m, offs, total = _hier_matrix(oc_list)
    cols = []
    for (b, t, _, _) in taps:
        wt = np.asarray(branch_w[b], np.float32)[:, :, t // 3, t % 3]   # (oc_b, mid)
        placed = np.zeros((total, MID_PAD), np.float32)
        placed[offs[b]:offs[b + 1], :mid] = wt
        cols.append(m @ placed)
    return np.concatenate(cols, axis=1)                                 # (OC, T*MID_PAD)


def _bn_affine_np(na):
    g = np.asarray(na["gamma"], np.float32)
    b = np.asarray(na["beta"], np.float32)
    mu = np.asarray(na["mean"], np.float32)
    v = np.asarray(na["var"], np.float32)
    sc = g / np.sqrt(v + BN_EPS)
    bi = b - mu * sc
    return sc.reshape(-1, 1), bi.reshape(-1, 1)


def _reduce_pad_np(w):
    """Reduce-conv weight (mid, Cin, kh, kw) -> (MID_PAD, Cin*kh*kw), zero-padded rows."""
    w = np.asarray(w, np.float32)
    mid = w.shape[0]
    k = w.reshape(mid, -1)
    out = np.zeros((MID_PAD, k.shape[1]), np.float32)
    out[:mid] = k
    return out


# ======================= Pallas kernel (whole ESPStage) =======================

def _esp_stage_kernel(rp_d_ref, xcols_ref, mask_ref,
                      rw_d_ref, wbig_d_ref, sc_d_ref, bi_d_ref, al_d_ref,
                      rw_b_ref, wbig_b_ref, sc_b_ref, bi_b_ref, al_b_ref,
                      pool_w_ref, sc_t_ref, bi_t_ref, al_t_ref,
                      y1_ref, y2_ref, y3_ref, xo_ref,
                      *, shifts, full, n_blocks):
    bf16 = jnp.bfloat16

    def bn_prelu(z, sc, bi, al):
        z = z * sc + bi
        return jnp.where(z >= 0.0, z, al * z)

    def branch_stack(y):
        # y: (MID_PAD, P) f32.  One (MID_PAD, P) piece per surviving tap:
        # lane-roll (XLU) + 0/1 validity mask (VPU), all 8-sublane aligned.
        parts = []
        for i, s in enumerate(shifts):
            v = y if s == 0 else pltpu.roll(y, shift=s, axis=1)
            if not full[i]:
                v = v * mask_ref[i]                    # (1, P) broadcast
            parts.append(v)
        return jnp.concatenate(parts, axis=0)          # (T*MID_PAD, P) f32

    def esp_block(rp, rw, wbig, sc, bi, al, residual):
        # reduce conv on the MXU (bf16 operands, f32 accumulate)
        y = jnp.dot(rw, rp.astype(bf16), preferred_element_type=jnp.float32)
        # all dilated-branch taps + hierarchical prefix adds as ONE matmul
        stacked = branch_stack(y).astype(bf16)
        acc = jnp.dot(wbig, stacked, preferred_element_type=jnp.float32)   # (OC, P)
        if residual is not None:
            acc = acc + residual                        # 1x1 reduce blocks: rp == input
        return bn_prelu(acc, sc, bi, al)

    # ---- downsample ESPBlock ----
    down = esp_block(rp_d_ref[...], rw_d_ref[...], wbig_d_ref[...],
                     sc_d_ref[...], bi_d_ref[...], al_d_ref[...], None)     # (OC, P)

    # ---- residual ESPBlocks (statically unrolled) ----
    feat = down
    for j in range(n_blocks):
        feat = esp_block(feat, rw_b_ref[j], wbig_b_ref[j],
                         sc_b_ref[j], bi_b_ref[j], al_b_ref[j], feat)

    # ---- x avg-pool (3x3, stride 2, pad 1, count_include_pad) ----
    xp = jnp.dot(pool_w_ref[...], xcols_ref[...],
                 preferred_element_type=jnp.float32)                         # (Cx, P)
    xo_ref[...] = xp

    # ---- stage tail: BN(eval) + PReLU per concat group (aligned full-ref stores) ----
    c_b = y1_ref.shape[0]
    c_d = y2_ref.shape[0]
    c_x = y3_ref.shape[0]
    y1_ref[...] = bn_prelu(feat, sc_t_ref[0:c_b, :], bi_t_ref[0:c_b, :],
                           al_t_ref[0:c_b, :])
    y2_ref[...] = bn_prelu(down, sc_t_ref[c_b:c_b + c_d, :],
                           bi_t_ref[c_b:c_b + c_d, :], al_t_ref[c_b:c_b + c_d, :])
    y3_ref[...] = bn_prelu(xp, sc_t_ref[c_b + c_d:c_b + c_d + c_x, :],
                           bi_t_ref[c_b + c_d:c_b + c_d + c_x, :],
                           al_t_ref[c_b + c_d:c_b + c_d + c_x, :])


# ======================= pallas_call wrapper =======================

def _full_spec(a):
    zeros = (0,) * a.ndim
    return pl.BlockSpec(a.shape, lambda i, z=zeros: z)


def esp_stage_pallas(rp_d, xcols, prep, cfg):
    inputs = (rp_d, xcols, prep["mask"],
              prep["rw_d"], prep["wbig_d"], prep["sc_d"], prep["bi_d"], prep["al_d"],
              prep["rw_b"], prep["wbig_b"], prep["sc_b"], prep["bi_b"], prep["al_b"],
              prep["pool_w"], prep["sc_t"], prep["bi_t"], prep["al_t"])
    p = cfg.p
    t8 = prep["wbig_d"].shape[1]

    kernel = functools.partial(_esp_stage_kernel, shifts=cfg.shifts,
                               full=cfg.full, n_blocks=cfg.n_blocks)

    out_shapes = (jax.ShapeDtypeStruct((cfg.oc, p), jnp.float32),   # residual-chain out
                  jax.ShapeDtypeStruct((cfg.oc, p), jnp.float32),   # down-block out
                  jax.ShapeDtypeStruct((cfg.cx, p), jnp.float32),   # BN(x_pooled)
                  jax.ShapeDtypeStruct((cfg.cx, p), jnp.float32))   # x_pooled (module x out)
    out_specs = tuple(pl.BlockSpec(s.shape, lambda i: (0, 0)) for s in out_shapes)

    flops = int(2 * MID_PAD * rp_d.shape[0] * p
                + 2 * cfg.oc * t8 * p
                + cfg.n_blocks * (2 * MID_PAD * cfg.oc * p + 2 * cfg.oc * t8 * p)
                + 2 * cfg.cx * xcols.shape[0] * p
                + 8 * (2 * cfg.oc + cfg.cx) * p)
    bytes_accessed = int(sum(int(np.prod(a.shape)) * a.dtype.itemsize for a in inputs)
                         + 4 * (2 * cfg.oc + 2 * cfg.cx) * p)

    return pl.pallas_call(
        kernel,
        out_shape=out_shapes,
        grid=(1,),
        in_specs=[_full_spec(a) for a in inputs],
        out_specs=out_specs,
        compiler_params=pltpu.CompilerParams(dimension_semantics=("arbitrary",)),
        cost_estimate=pl.CostEstimate(flops=flops, transcendentals=0,
                                      bytes_accessed=bytes_accessed),
    )(*inputs)


# ======================= glue (layout-only XLA inside the forward jit) =======================

def _im2col_3x3(x, stride, padding, dilation):
    """im2col of a 3x3 (strided) conv / pool window -> (C*9, N*OH*OW), n-major."""
    n, c, h, w = x.shape
    oh = (h + 2 * padding - dilation * 2 - 1) // stride + 1
    ow = (w + 2 * padding - dilation * 2 - 1) // stride + 1
    xp = jnp.pad(x, ((0, 0), (0, 0), (padding, padding), (padding, padding)))
    cols = []
    for i in range(3):
        for j in range(3):
            h0 = i * dilation
            w0 = j * dilation
            patch = jax.lax.slice(
                xp, (0, 0, h0, w0),
                (n, c, h0 + (oh - 1) * stride + 1, w0 + (ow - 1) * stride + 1),
                (1, 1, stride, stride))
            cols.append(patch)                       # (N, C, OH, OW)
    cols = jnp.stack(cols, axis=2)                   # (N, C, 9, OH, OW)
    cols = jnp.transpose(cols, (1, 2, 0, 3, 4))      # (C, 9, N, OH, OW)
    return cols.reshape(c * 9, n * oh * ow), oh, ow


def esp_stage_fused(y, x, prep, cfg):
    """ESPStage forward (use_unit=True, use_x=True), NCHW at the boundary."""
    n, _, h, w = y.shape
    cx = x.shape[1]
    oh, ow = h // 2, w // 2

    rp_d, _, _ = _im2col_3x3(y, stride=2, padding=1, dilation=1)    # (Cy*9, P)
    xcols, _, _ = _im2col_3x3(x, stride=2, padding=1, dilation=1)   # (Cx*9, P)

    y1, y2, y3, xo = esp_stage_pallas(rp_d, xcols, prep, cfg)

    y_flat = jnp.concatenate([y1, y2, y3], axis=0)                  # (24, P)
    c_out = y_flat.shape[0]
    y_out = y_flat.reshape(c_out, n, oh, ow).transpose(1, 0, 2, 3)
    x_out = xo.reshape(cx, n, oh, ow).transpose(1, 0, 2, 3)
    return y_out, x_out


# ======================= one-time parameter preprocessing (hoisted) =======================

def prepare_esp_stage(params, n, h, w, x_channels):
    oh, ow = h // 2, w // 2
    p = n * oh * ow
    taps = _surviving_taps(oh, ow)
    masks, shifts, full = _tap_masks_shifts(n, oh, ow, taps)

    unit = params["unit"]
    blocks = unit["blocks"]
    n_blocks = len(blocks)

    pd = unit["down"]
    rw_d = _reduce_pad_np(pd["reduce_w"])                                   # (8, Cy*9)
    wbig_d = _branch_big_weight(pd["branch_w"], taps)                       # (OC, T*8)
    sc_d, bi_d = _bn_affine_np(pd["na"])
    al_d = np.asarray(pd["na"]["alpha"], np.float32).reshape(-1, 1)

    rw_b = np.stack([_reduce_pad_np(pb["reduce_w"]) for pb in blocks])      # (B, 8, OC)
    wbig_b = np.stack([_branch_big_weight(pb["branch_w"], taps) for pb in blocks])
    sc_b = np.stack([_bn_affine_np(pb["na"])[0] for pb in blocks])
    bi_b = np.stack([_bn_affine_np(pb["na"])[1] for pb in blocks])
    al_b = np.stack([np.asarray(pb["na"]["alpha"], np.float32).reshape(-1, 1)
                     for pb in blocks])

    pool_w = np.zeros((x_channels, x_channels * 9), np.float32)
    for c in range(x_channels):
        pool_w[c, c * 9:(c + 1) * 9] = 1.0 / 9.0

    sc_t, bi_t = _bn_affine_np(params["na"])
    al_t = np.asarray(params["na"]["alpha"], np.float32).reshape(-1, 1)

    prep = {
        "mask": jnp.asarray(masks),
        "rw_d": jnp.asarray(rw_d, jnp.bfloat16),
        "wbig_d": jnp.asarray(wbig_d, jnp.bfloat16),
        "sc_d": jnp.asarray(sc_d), "bi_d": jnp.asarray(bi_d), "al_d": jnp.asarray(al_d),
        "rw_b": jnp.asarray(rw_b, jnp.bfloat16),
        "wbig_b": jnp.asarray(wbig_b, jnp.bfloat16),
        "sc_b": jnp.asarray(sc_b), "bi_b": jnp.asarray(bi_b), "al_b": jnp.asarray(al_b),
        "pool_w": jnp.asarray(pool_w),
        "sc_t": jnp.asarray(sc_t), "bi_t": jnp.asarray(bi_t), "al_t": jnp.asarray(al_t),
    }
    cfg = EspStageConfig(shifts=shifts, full=full, n_blocks=n_blocks,
                         p=p, oc=int(wbig_d.shape[0]), cx=x_channels)
    return prep, cfg


# ======================= pure-JAX reference (correctness check) =======================

def _conv_ref(x, w, stride=1, padding=0, dilation=1):
    return jax.lax.conv_general_dilated(
        x, w, window_strides=(stride, stride),
        padding=((padding, padding), (padding, padding)),
        rhs_dilation=(dilation, dilation),
        dimension_numbers=("NCHW", "OIHW", "NCHW"),
        precision=jax.lax.Precision.HIGHEST)


def _norm_act_ref(x, na):
    scale = na["gamma"] / jnp.sqrt(na["var"] + BN_EPS)
    bias = na["beta"] - na["mean"] * scale
    z = x * scale[None, :, None, None] + bias[None, :, None, None]
    return jnp.where(z >= 0.0, z, na["alpha"][None, :, None, None] * z)


def _esp_block_ref(x, p, downsample, residual):
    if downsample:
        y = _conv_ref(x, p["reduce_w"], stride=2, padding=1)
    else:
        y = _conv_ref(x, p["reduce_w"])
    outs, y_prev = [], None
    for i, d in enumerate(DILATIONS):
        yi = _conv_ref(y, p["branch_w"][i], padding=d, dilation=d)
        if y_prev is not None:
            yi = yi + y_prev
        outs.append(yi)
        if i > 0:                                    # exclude_first=True
            y_prev = yi
    out = jnp.concatenate(outs, axis=1)
    if residual:
        out = out + x
    return _norm_act_ref(out, p["na"])


def _esp_stage_ref(y, x, params):
    u = _esp_block_ref(y, params["unit"]["down"], downsample=True, residual=False)
    b = u
    for pb in params["unit"]["blocks"]:
        b = _esp_block_ref(b, pb, downsample=False, residual=True)
    y_unit = jnp.concatenate([b, u], axis=1)
    xp = jax.lax.reduce_window(x, 0.0, jax.lax.add, (1, 1, 3, 3), (1, 1, 2, 2),
                               ((0, 0), (0, 0), (1, 1), (1, 1))) / 9.0
    y_cat = jnp.concatenate([y_unit, xp], axis=1)
    return _norm_act_ref(y_cat, params["na"]), xp


# ======================= deterministic parameter init =======================

def _init_norm_act(key, channels):
    k = jax.random.split(key, 4)
    return {
        "gamma": 1.0 + 0.1 * jax.random.normal(k[0], (channels,), jnp.float32),
        "beta": 0.1 * jax.random.normal(k[1], (channels,), jnp.float32),
        "mean": 0.1 * jax.random.normal(k[2], (channels,), jnp.float32),
        "var": 1.0 + jnp.abs(jax.random.normal(k[3], (channels,), jnp.float32)),
        "alpha": jnp.full((channels,), 0.25, jnp.float32),    # PReLU default
    }


def _init_esp_block(key, in_channels, out_channels, downsample):
    mid = out_channels // 5
    extra = out_channels - 4 * mid
    keys = jax.random.split(key, 7)
    if downsample:
        reduce_w = 0.1 * jax.random.normal(keys[0], (mid, in_channels, 3, 3), jnp.float32)
    else:
        reduce_w = 0.1 * jax.random.normal(keys[0], (mid, in_channels, 1, 1), jnp.float32)
    branch_w = []
    for i in range(5):
        oc = extra if i == 0 else mid
        branch_w.append(0.1 * jax.random.normal(keys[1 + i], (oc, mid, 3, 3), jnp.float32))
    return {"reduce_w": reduce_w, "branch_w": branch_w,
            "na": _init_norm_act(keys[6], out_channels)}


def init_esp_stage_params(key):
    unit_out = Y_OUT_CHANNELS - X_CHANNELS     # 20
    mid = unit_out // 2                        # 10
    keys = jax.random.split(key, LAYERS + 1)
    unit = {
        "down": _init_esp_block(keys[0], Y_IN_CHANNELS, mid, downsample=True),
        "blocks": [_init_esp_block(keys[1 + i], mid, mid, downsample=False)
                   for i in range(LAYERS - 1)],
    }
    return {"unit": unit, "na": _init_norm_act(keys[LAYERS], Y_OUT_CHANNELS)}


# ======================= Main =======================

if __name__ == "__main__":
    root = jax.random.PRNGKey(0)
    k_params, k_y, k_x = jax.random.split(root, 3)

    params = init_esp_stage_params(k_params)
    y_in = jax.random.normal(k_y, (BATCH, Y_IN_CHANNELS, SPATIAL, SPATIAL), jnp.float32)
    x_in = jax.random.normal(k_x, (BATCH, X_CHANNELS, SPATIAL, SPATIAL), jnp.float32)

    # weight-only preprocessing: runs once, outside the per-forward jit
    prep, cfg = prepare_esp_stage(params, BATCH, SPATIAL, SPATIAL, X_CHANNELS)

    fwd = jax.jit(lambda y, x, prep_: esp_stage_fused(y, x, prep_, cfg))
    y_out, x_out = fwd(y_in, x_in, prep)
    jax.block_until_ready((y_out, x_out))

    assert y_out.shape == (BATCH, Y_OUT_CHANNELS, SPATIAL // 2, SPATIAL // 2), y_out.shape
    assert x_out.shape == (BATCH, X_CHANNELS, SPATIAL // 2, SPATIAL // 2), x_out.shape
    assert bool(jnp.all(jnp.isfinite(y_out))) and bool(jnp.all(jnp.isfinite(x_out)))

    # cross-check against a pure-JAX/XLA reference of the same module
    y_ref, x_ref = jax.jit(_esp_stage_ref)(y_in, x_in, params)
    np.testing.assert_allclose(np.asarray(y_out), np.asarray(y_ref), rtol=2.5e-2, atol=2.5e-2)
    np.testing.assert_allclose(np.asarray(x_out), np.asarray(x_ref), rtol=2.5e-2, atol=2.5e-2)

    print("KERNEL_OK")
</pallas_src>

<mosaic_0001>
module attributes {stable_mosaic.version = 11 : i64} {
  func.func @_esp_stage_kernel(%arg0: i32, %arg1: memref<72x128xf32, #tpu.memory_space<vmem>>, %arg2: memref<36x128xf32, #tpu.memory_space<vmem>>, %arg3: memref<29x1x128xf32, #tpu.memory_space<vmem>>, %arg4: memref<8x72xbf16, #tpu.memory_space<vmem>>, %arg5: memref<10x232xbf16, #tpu.memory_space<vmem>>, %arg6: memref<10x1xf32, #tpu.memory_space<vmem>>, %arg7: memref<10x1xf32, #tpu.memory_space<vmem>>, %arg8: memref<10x1xf32, #tpu.memory_space<vmem>>, %arg9: memref<1x8x10xbf16, #tpu.memory_space<vmem>>, %arg10: memref<1x10x232xbf16, #tpu.memory_space<vmem>>, %arg11: memref<1x10x1xf32, #tpu.memory_space<vmem>>, %arg12: memref<1x10x1xf32, #tpu.memory_space<vmem>>, %arg13: memref<1x10x1xf32, #tpu.memory_space<vmem>>, %arg14: memref<4x36xf32, #tpu.memory_space<vmem>>, %arg15: memref<24x1xf32, #tpu.memory_space<vmem>>, %arg16: memref<24x1xf32, #tpu.memory_space<vmem>>, %arg17: memref<24x1xf32, #tpu.memory_space<vmem>>, %arg18: memref<10x128xf32, #tpu.memory_space<vmem>>, %arg19: memref<10x128xf32, #tpu.memory_space<vmem>>, %arg20: memref<4x128xf32, #tpu.memory_space<vmem>>, %arg21: memref<4x128xf32, #tpu.memory_space<vmem>>) attributes {dimension_semantics = [#tpu.dimension_semantics<arbitrary>], iteration_bounds = array<i64: 1>, scalar_prefetch = 0 : i64, scratch_operands = 0 : i64, tpu.core_type = #tpu.core_type<tc>, window_params = [{pipeline_mode = #tpu.pipeline_mode<synchronous>, transform_indices = @transform_0, window_bounds = array<i64: 72, 128>}, {pipeline_mode = #tpu.pipeline_mode<synchronous>, transform_indices = @transform_1, window_bounds = array<i64: 36, 128>}, {pipeline_mode = #tpu.pipeline_mode<synchronous>, transform_indices = @transform_2, window_bounds = array<i64: 29, 1, 128>}, {pipeline_mode = #tpu.pipeline_mode<synchronous>, transform_indices = @transform_3, window_bounds = array<i64: 8, 72>}, {pipeline_mode = #tpu.pipeline_mode<synchronous>, transform_indices = @transform_4, window_bounds = array<i64: 10, 232>}, {pipeline_mode = #tpu.pipeline_mode<synchronous>, transform_indices = @transform_5, window_bounds = array<i64: 10, 1>}, {pipeline_mode = #tpu.pipeline_mode<synchronous>, transform_indices = @transform_6, window_bounds = array<i64: 10, 1>}, {pipeline_mode = #tpu.pipeline_mode<synchronous>, transform_indices = @transform_7, window_bounds = array<i64: 10, 1>}, {pipeline_mode = #tpu.pipeline_mode<synchronous>, transform_indices = @transform_8, window_bounds = array<i64: 1, 8, 10>}, {pipeline_mode = #tpu.pipeline_mode<synchronous>, transform_indices = @transform_9, window_bounds = array<i64: 1, 10, 232>}, {pipeline_mode = #tpu.pipeline_mode<synchronous>, transform_indices = @transform_10, window_bounds = array<i64: 1, 10, 1>}, {pipeline_mode = #tpu.pipeline_mode<synchronous>, transform_indices = @transform_11, window_bounds = array<i64: 1, 10, 1>}, {pipeline_mode = #tpu.pipeline_mode<synchronous>, transform_indices = @transform_12, window_bounds = array<i64: 1, 10, 1>}, {pipeline_mode = #tpu.pipeline_mode<synchronous>, transform_indices = @transform_13, window_bounds = array<i64: 4, 36>}, {pipeline_mode = #tpu.pipeline_mode<synchronous>, transform_indices = @transform_14, window_bounds = array<i64: 24, 1>}, {pipeline_mode = #tpu.pipeline_mode<synchronous>, transform_indices = @transform_15, window_bounds = array<i64: 24, 1>}, {pipeline_mode = #tpu.pipeline_mode<synchronous>, transform_indices = @transform_16, window_bounds = array<i64: 24, 1>}, {pipeline_mode = #tpu.pipeline_mode<synchronous>, transform_indices = @transform_17, window_bounds = array<i64: 10, 128>}, {pipeline_mode = #tpu.pipeline_mode<synchronous>, transform_indices = @transform_18, window_bounds = array<i64: 10, 128>}, {pipeline_mode = #tpu.pipeline_mode<synchronous>, transform_indices = @transform_19, window_bounds = array<i64: 4, 128>}, {pipeline_mode = #tpu.pipeline_mode<synchronous>, transform_indices = @transform_20, window_bounds = array<i64: 4, 128>}]} {
    %c0 = arith.constant 0 : index
    %c0_0 = arith.constant 0 : index
    %0 = vector.load %arg1[%c0, %c0_0] : memref<72x128xf32, #tpu.memory_space<vmem>>, vector<72x128xf32>
    %c0_1 = arith.constant 0 : index
    %c0_2 = arith.constant 0 : index
    %1 = vector.load %arg4[%c0_1, %c0_2] : memref<8x72xbf16, #tpu.memory_space<vmem>>, vector<8x72xbf16>
    %c0_3 = arith.constant 0 : index
    %c0_4 = arith.constant 0 : index
    %2 = vector.load %arg5[%c0_3, %c0_4] : memref<10x232xbf16, #tpu.memory_space<vmem>>, vector<10x232xbf16>
    %c0_5 = arith.constant 0 : index
    %c0_6 = arith.constant 0 : index
    %3 = vector.load %arg6[%c0_5, %c0_6] : memref<10x1xf32, #tpu.memory_space<vmem>>, vector<10x1xf32>
    %c0_7 = arith.constant 0 : index
    %c0_8 = arith.constant 0 : index
    %4 = vector.load %arg7[%c0_7, %c0_8] : memref<10x1xf32, #tpu.memory_space<vmem>>, vector<10x1xf32>
    %c0_9 = arith.constant 0 : index
    %c0_10 = arith.constant 0 : index
    %5 = vector.load %arg8[%c0_9, %c0_10] : memref<10x1xf32, #tpu.memory_space<vmem>>, vector<10x1xf32>
    %6 = arith.truncf %0 : vector<72x128xf32> to vector<72x128xbf16>
    %cst = arith.constant dense<0.000000e+00> : vector<8x128xf32>
    %7 = tpu.matmul %1, %6, %cst {dimension_numbers = #tpu.dot_dimension_numbers<[1], [0], [0], [1], [0, 0, 1, 1], [], []>} : vector<8x72xbf16>, vector<72x128xbf16>, vector<8x128xf32> -> vector<8x128xf32>
    %c9_i32 = arith.constant 9 : i32
    %8 = tpu.dynamic_rotate %7 by %c9_i32 dim 1 : vector<8x128xf32>, i32 -> vector<8x128xf32>
    %c0_11 = arith.constant 0 : index
    %c0_12 = arith.constant 0 : index
    %c0_13 = arith.constant 0 : index
    %9 = vector.load %arg3[%c0_11, %c0_12, %c0_13] : memref<29x1x128xf32, #tpu.memory_space<vmem>>, vector<1x1x128xf32>
    %10 = vector.shape_cast %9 : vector<1x1x128xf32> to vector<1x128xf32>
    %11 = vector.broadcast %10 : vector<1x128xf32> to vector<8x128xf32>
    %12 = arith.mulf %8, %11 : vector<8x128xf32>
    %c8_i32 = arith.constant 8 : i32
    %13 = tpu.dynamic_rotate %7 by %c8_i32 dim 1 : vector<8x128xf32>, i32 -> vector<8x128xf32>
    %c1 = arith.constant 1 : index
    %c0_14 = arith.constant 0 : index
    %c0_15 = arith.constant 0 : index
    %14 = vector.load %arg3[%c1, %c0_14, %c0_15] : memref<29x1x128xf32, #tpu.memory_space<vmem>>, vector<1x1x128xf32>
    %15 = vector.shape_cast %14 : vector<1x1x128xf32> to vector<1x128xf32>
    %16 = vector.broadcast %15 : vector<1x128xf32> to vector<8x128xf32>
    %17 = arith.mulf %13, %16 : vector<8x128xf32>
    %c7_i32 = arith.constant 7 : i32
    %18 = tpu.dynamic_rotate %7 by %c7_i32 dim 1 : vector<8x128xf32>, i32 -> vector<8x128xf32>
    %c2 = arith.constant 2 : index
    %c0_16 = arith.constant 0 : index
    %c0_17 = arith.constant 0 : index
    %19 = vector.load %arg3[%c2, %c0_16, %c0_17] : memref<29x1x128xf32, #tpu.memory_space<vmem>>, vector<1x1x128xf32>
    %20 = vector.shape_cast %19 : vector<1x1x128xf32> to vector<1x128xf32>
    %21 = vector.broadcast %20 : vector<1x128xf32> to vector<8x128xf32>
    %22 = arith.mulf %18, %21 : vector<8x128xf32>
    %c1_i32 = arith.constant 1 : i32
    %23 = tpu.dynamic_rotate %7 by %c1_i32 dim 1 : vector<8x128xf32>, i32 -> vector<8x128xf32>
    %c3 = arith.constant 3 : index
    %c0_18 = arith.constant 0 : index
    %c0_19 = arith.constant 0 : index
    %24 = vector.load %arg3[%c3, %c0_18, %c0_19] : memref<29x1x128xf32, #tpu.memory_space<vmem>>, vector<1x1x128xf32>
    %25 = vector.shape_cast %24 : vector<1x1x128xf32> to vector<1x128xf32>
    %26 = vector.broadcast %25 : vector<1x128xf32> to vector<8x128xf32>
    %27 = arith.mulf %23, %26 : vector<8x128xf32>
    %c127_i32 = arith.constant 127 : i32
    %28 = tpu.dynamic_rotate %7 by %c127_i32 dim 1 : vector<8x128xf32>, i32 -> vector<8x128xf32>
    %c5 = arith.constant 5 : index
    %c0_20 = arith.constant 0 : index
    %c0_21 = arith.constant 0 : index
    %29 = vector.load %arg3[%c5, %c0_20, %c0_21] : memref<29x1x128xf32, #tpu.memory_space<vmem>>, vector<1x1x128xf32>
    %30 = vector.shape_cast %29 : vector<1x1x128xf32> to vector<1x128xf32>
    %31 = vector.broadcast %30 : vector<1x128xf32> to vector<8x128xf32>
    %32 = arith.mulf %28, %31 : vector<8x128xf32>
    %c121_i32 = arith.constant 121 : i32
    %33 = tpu.dynamic_rotate %7 by %c121_i32 dim 1 : vector<8x128xf32>, i32 -> vector<8x128xf32>
    %c6 = arith.constant 6 : index
    %c0_22 = arith.constant 0 : index
    %c0_23 = arith.constant 0 : index
    %34 = vector.load %arg3[%c6, %c0_22, %c0_23] : memref<29x1x128xf32, #tpu.memory_space<vmem>>, vector<1x1x128xf32>
    %35 = vector.shape_cast %34 : vector<1x1x128xf32> to vector<1x128xf32>
    %36 = vector.broadcast %35 : vector<1x128xf32> to vector<8x128xf32>
    %37 = arith.mulf %33, %36 : vector<8x128xf32>
    %c120_i32 = arith.constant 120 : i32
    %38 = tpu.dynamic_rotate %7 by %c120_i32 dim 1 : vector<8x128xf32>, i32 -> vector<8x128xf32>
    %c7 = arith.constant 7 : index
    %c0_24 = arith.constant 0 : index
    %c0_25 = arith.constant 0 : index
    %39 = vector.load %arg3[%c7, %c0_24, %c0_25] : memref<29x1x128xf32, #tpu.memory_space<vmem>>, vector<1x1x128xf32>
    %40 = vector.shape_cast %39 : vector<1x1x128xf32> to vector<1x128xf32>
    %41 = vector.broadcast %40 : vector<1x128xf32> to vector<8x128xf32>
    %42 = arith.mulf %38, %41 : vector<8x128xf32>
    %c119_i32 = arith.constant 119 : i32
    %43 = tpu.dynamic_rotate %7 by %c119_i32 dim 1 : vector<8x128xf32>, i32 -> vector<8x128xf32>
    %c8 = arith.constant 8 : index
    %c0_26 = arith.constant 0 : index
    %c0_27 = arith.constant 0 : index
    %44 = vector.load %arg3[%c8, %c0_26, %c0_27] : memref<29x1x128xf32, #tpu.memory_space<vmem>>, vector<1x1x128xf32>
    %45 = vector.shape_cast %44 : vector<1x1x128xf32> to vector<1x128xf32>
    %46 = vector.broadcast %45 : vector<1x128xf32> to vector<8x128xf32>
    %47 = arith.mulf %43, %46 : vector<8x128xf32>
    %c18_i32 = arith.constant 18 : i32
    %48 = tpu.dynamic_rotate %7 by %c18_i32 dim 1 : vector<8x128xf32>, i32 -> vector<8x128xf32>
    %c9 = arith.constant 9 : index
    %c0_28 = arith.constant 0 : index
    %c0_29 = arith.constant 0 : index
    %49 = vector.load %arg3[%c9, %c0_28, %c0_29] : memref<29x1x128xf32, #tpu.memory_space<vmem>>, vector<1x1x128xf32>
    %50 = vector.shape_cast %49 : vector<1x1x128xf32> to vector<1x128xf32>
    %51 = vector.broadcast %50 : vector<1x128xf32> to vector<8x128xf32>
    %52 = arith.mulf %48, %51 : vector<8x128xf32>
    %c16_i32 = arith.constant 16 : i32
    %53 = tpu.dynamic_rotate %7 by %c16_i32 dim 1 : vector<8x128xf32>, i32 -> vector<8x128xf32>
    %c10 = arith.constant 10 : index
    %c0_30 = arith.constant 0 : index
    %c0_31 = arith.constant 0 : index
    %54 = vector.load %arg3[%c10, %c0_30, %c0_31] : memref<29x1x128xf32, #tpu.memory_space<vmem>>, vector<1x1x128xf32>
    %55 = vector.shape_cast %54 : vector<1x1x128xf32> to vector<1x128xf32>
    %56 = vector.broadcast %55 : vector<1x128xf32> to vector<8x128xf32>
    %57 = arith.mulf %53, %56 : vector<8x128xf32>
    %c14_i32 = arith.constant 14 : i32
    %58 = tpu.dynamic_rotate %7 by %c14_i32 dim 1 : vector<8x128xf32>, i32 -> vector<8x128xf32>
    %c11 = arith.constant 11 : index
    %c0_32 = arith.constant 0 : index
    %c0_33 = arith.constant 0 : index
    %59 = vector.load %arg3[%c11, %c0_32, %c0_33] : memref<29x1x128xf32, #tpu.memory_space<vmem>>, vector<1x1x128xf32>
    %60 = vector.shape_cast %59 : vector<1x1x128xf32> to vector<1x128xf32>
    %61 = vector.broadcast %60 : vector<1x128xf32> to vector<8x128xf32>
    %62 = arith.mulf %58, %61 : vector<8x128xf32>
    %c2_i32 = arith.constant 2 : i32
    %63 = tpu.dynamic_rotate %7 by %c2_i32 dim 1 : vector<8x128xf32>, i32 -> vector<8x128xf32>
    %c12 = arith.constant 12 : index
    %c0_34 = arith.constant 0 : index
    %c0_35 = arith.constant 0 : index
    %64 = vector.load %arg3[%c12, %c0_34, %c0_35] : memref<29x1x128xf32, #tpu.memory_space<vmem>>, vector<1x1x128xf32>
    %65 = vector.shape_cast %64 : vector<1x1x128xf32> to vector<1x128xf32>
    %66 = vector.broadcast %65 : vector<1x128xf32> to vector<8x128xf32>
    %67 = arith.mulf %63, %66 : vector<8x128xf32>
    %c126_i32 = arith.constant 126 : i32
    %68 = tpu.dynamic_rotate %7 by %c126_i32 dim 1 : vector<8x128xf32>, i32 -> vector<8x128xf32>
    %c14 = arith.constant 14 : index
    %c0_36 = arith.constant 0 : index
    %c0_37 = arith.constant 0 : index
    %69 = vector.load %arg3[%c14, %c0_36, %c0_37] : memref<29x1x128xf32, #tpu.memory_space<vmem>>, vector<1x1x128xf32>
    %70 = vector.shape_cast %69 : vector<1x1x128xf32> to vector<1x128xf32>
    %71 = vector.broadcast %70 : vector<1x128xf32> to vector<8x128xf32>
    %72 = arith.mulf %68, %71 : vector<8x128xf32>
    %c114_i32 = arith.constant 114 : i32
    %73 = tpu.dynamic_rotate %7 by %c114_i32 dim 1 : vector<8x128xf32>, i32 -> vector<8x128xf32>
    %c15 = arith.constant 15 : index
    %c0_38 = arith.constant 0 : index
    %c0_39 = arith.constant 0 : index
    %74 = vector.load %arg3[%c15, %c0_38, %c0_39] : memref<29x1x128xf32, #tpu.memory_space<vmem>>, vector<1x1x128xf32>
    %75 = vector.shape_cast %74 : vector<1x1x128xf32> to vector<1x128xf32>
    %76 = vector.broadcast %75 : vector<1x128xf32> to vector<8x128xf32>
    %77 = arith.mulf %73, %76 : vector<8x128xf32>
    %c112_i32 = arith.constant 112 : i32
    %78 = tpu.dynamic_rotate %7 by %c112_i32 dim 1 : vector<8x128xf32>, i32 -> vector<8x128xf32>
    %c16 = arith.constant 16 : index
    %c0_40 = arith.constant 0 : index
    %c0_41 = arith.constant 0 : index
    %79 = vector.load %arg3[%c16, %c0_40, %c0_41] : memref<29x1x128xf32, #tpu.memory_space<vmem>>, vector<1x1x128xf32>
    %80 = vector.shape_cast %79 : vector<1x1x128xf32> to vector<1x128xf32>
    %81 = vector.broadcast %80 : vector<1x128xf32> to vector<8x128xf32>
    %82 = arith.mulf %78, %81 : vector<8x128xf32>
    %c110_i32 = arith.constant 110 : i32
    %83 = tpu.dynamic_rotate %7 by %c110_i32 dim 1 : vector<8x128xf32>, i32 -> vector<8x128xf32>
    %c17 = arith.constant 17 : index
    %c0_42 = arith.constant 0 : index
    %c0_43 = arith.constant 0 : index
    %84 = vector.load %arg3[%c17, %c0_42, %c0_43] : memref<29x1x128xf32, #tpu.memory_space<vmem>>, vector<1x1x128xf32>
    %85 = vector.shape_cast %84 : vector<1x1x128xf32> to vector<1x128xf32>
    %86 = vector.broadcast %85 : vector<1x128xf32> to vector<8x128xf32>
    %87 = arith.mulf %83, %86 : vector<8x128xf32>
    %c36_i32 = arith.constant 36 : i32
    %88 = tpu.dynamic_rotate %7 by %c36_i32 dim 1 : vector<8x128xf32>, i32 -> vector<8x128xf32>
    %c18 = arith.constant 18 : index
    %c0_44 = arith.constant 0 : index
    %c0_45 = arith.constant 0 : index
    %89 = vector.load %arg3[%c18, %c0_44, %c0_45] : memref<29x1x128xf32, #tpu.memory_space<vmem>>, vector<1x1x128xf32>
    %90 = vector.shape_cast %89 : vector<1x1x128xf32> to vector<1x128xf32>
    %91 = vector.broadcast %90 : vector<1x128xf32> to vector<8x128xf32>
    %92 = arith.mulf %88, %91 : vector<8x128xf32>
    %c32_i32 = arith.constant 32 : i32
    %93 = tpu.dynamic_rotate %7 by %c32_i32 dim 1 : vector<8x128xf32>, i32 -> vector<8x128xf32>
    %c19 = arith.constant 19 : index
    %c0_46 = arith.constant 0 : index
    %c0_47 = arith.constant 0 : index
    %94 = vector.load %arg3[%c19, %c0_46, %c0_47] : memref<29x1x128xf32, #tpu.memory_space<vmem>>, vector<1x1x128xf32>
    %95 = vector.shape_cast %94 : vector<1x1x128xf32> to vector<1x128xf32>
    %96 = vector.broadcast %95 : vector<1x128xf32> to vector<8x128xf32>
    %97 = arith.mulf %93, %96 : vector<8x128xf32>
    %c28_i32 = arith.constant 28 : i32
    %98 = tpu.dynamic_rotate %7 by %c28_i32 dim 1 : vector<8x128xf32>, i32 -> vector<8x128xf32>
    %c20 = arith.constant 20 : index
    %c0_48 = arith.constant 0 : index
    %c0_49 = arith.constant 0 : index
    %99 = vector.load %arg3[%c20, %c0_48, %c0_49] : memref<29x1x128xf32, #tpu.memory_space<vmem>>, vector<1x1x128xf32>
    %100 = vector.shape_cast %99 : vector<1x1x128xf32> to vector<1x128xf32>
    %101 = vector.broadcast %100 : vector<1x128xf32> to vector<8x128xf32>
    %102 = arith.mulf %98, %101 : vector<8x128xf32>
    %c4_i32 = arith.constant 4 : i32
    %103 = tpu.dynamic_rotate %7 by %c4_i32 dim 1 : vector<8x128xf32>, i32 -> vector<8x128xf32>
    %c21 = arith.constant 21 : index
    %c0_50 = arith.constant 0 : index
    %c0_51 = arith.constant 0 : index
    %104 = vector.load %arg3[%c21, %c0_50, %c0_51] : memref<29x1x128xf32, #tpu.memory_space<vmem>>, vector<1x1x128xf32>
    %105 = vector.shape_cast %104 : vector<1x1x128xf32> to vector<1x128xf32>
    %106 = vector.broadcast %105 : vector<1x128xf32> to vector<8x128xf32>
    %107 = arith.mulf %103, %106 : vector<8x128xf32>
    %c124_i32 = arith.constant 124 : i32
    %108 = tpu.dynamic_rotate %7 by %c124_i32 dim 1 : vector<8x128xf32>, i32 -> vector<8x128xf32>
    %c23 = arith.constant 23 : index
    %c0_52 = arith.constant 0 : index
    %c0_53 = arith.constant 0 : index
    %109 = vector.load %arg3[%c23, %c0_52, %c0_53] : memref<29x1x128xf32, #tpu.memory_space<vmem>>, vector<1x1x128xf32>
    %110 = vector.shape_cast %109 : vector<1x1x128xf32> to vector<1x128xf32>
    %111 = vector.broadcast %110 : vector<1x128xf32> to vector<8x128xf32>
    %112 = arith.mulf %108, %111 : vector<8x128xf32>
    %c100_i32 = arith.constant 100 : i32
    %113 = tpu.dynamic_rotate %7 by %c100_i32 dim 1 : vector<8x128xf32>, i32 -> vector<8x128xf32>
    %c24 = arith.constant 24 : index
    %c0_54 = arith.constant 0 : index
    %c0_55 = arith.constant 0 : index
    %114 = vector.load %arg3[%c24, %c0_54, %c0_55] : memref<29x1x128xf32, #tpu.memory_space<vmem>>, vector<1x1x128xf32>
    %115 = vector.shape_cast %114 : vector<1x1x128xf32> to vector<1x128xf32>
    %116 = vector.broadcast %115 : vector<1x128xf32> to vector<8x128xf32>
    %117 = arith.mulf %113, %116 : vector<8x128xf32>
    %c96_i32 = arith.constant 96 : i32
    %118 = tpu.dynamic_rotate %7 by %c96_i32 dim 1 : vector<8x128xf32>, i32 -> vector<8x128xf32>
    %c25 = arith.constant 25 : index
    %c0_56 = arith.constant 0 : index
    %c0_57 = arith.constant 0 : index
    %119 = vector.load %arg3[%c25, %c0_56, %c0_57] : memref<29x1x128xf32, #tpu.memory_space<vmem>>, vector<1x1x128xf32>
    %120 = vector.shape_cast %119 : vector<1x1x128xf32> to vector<1x128xf32>
    %121 = vector.broadcast %120 : vector<1x128xf32> to vector<8x128xf32>
    %122 = arith.mulf %118, %121 : vector<8x128xf32>
    %c92_i32 = arith.constant 92 : i32
    %123 = tpu.dynamic_rotate %7 by %c92_i32 dim 1 : vector<8x128xf32>, i32 -> vector<8x128xf32>
    %c26 = arith.constant 26 : index
    %c0_58 = arith.constant 0 : index
    %c0_59 = arith.constant 0 : index
    %124 = vector.load %arg3[%c26, %c0_58, %c0_59] : memref<29x1x128xf32, #tpu.memory_space<vmem>>, vector<1x1x128xf32>
    %125 = vector.shape_cast %124 : vector<1x1x128xf32> to vector<1x128xf32>
    %126 = vector.broadcast %125 : vector<1x128xf32> to vector<8x128xf32>
    %127 = arith.mulf %123, %126 : vector<8x128xf32>
    %128 = tpu.concatenate %12, %17, %22, %27, %7, %32, %37, %42, %47, %52, %57, %62, %67, %7, %72, %77 in 0 : vector<8x128xf32>, vector<8x128xf32>, vector<8x128xf32>, vector<8x128xf32>, vector<8x128xf32>, vector<8x128xf32>, vector<8x128xf32>, vector<8x128xf32>, vector<8x128xf32>, vector<8x128xf32>, vector<8x128xf32>, vector<8x128xf32>, vector<8x128xf32>, vector<8x128xf32>, vector<8x128xf32>, vector<8x128xf32> -> vector<128x128xf32>
    %129 = tpu.concatenate %82, %87, %92, %97, %102, %107, %7, %112, %117, %122, %127, %7, %7 in 0 : vector<8x128xf32>, vector<8x128xf32>, vector<8x128xf32>, vector<8x128xf32>, vector<8x128xf32>, vector<8x128xf32>, vector<8x128xf32>, vector<8x128xf32>, vector<8x128xf32>, vector<8x128xf32>, vector<8x128xf32>, vector<8x128xf32>, vector<8x128xf32> -> vector<104x128xf32>
    %130 = tpu.concatenate %128, %129 in 0 : vector<128x128xf32>, vector<104x128xf32> -> vector<232x128xf32>
    %131 = arith.truncf %130 : vector<232x128xf32> to vector<232x128xbf16>
    %cst_60 = arith.constant dense<0.000000e+00> : vector<10x128xf32>
    %132 = tpu.matmul %2, %131, %cst_60 {dimension_numbers = #tpu.dot_dimension_numbers<[1], [0], [0], [1], [0, 0, 1, 1], [], []>} : vector<10x232xbf16>, vector<232x128xbf16>, vector<10x128xf32> -> vector<10x128xf32>
    %133 = vector.broadcast %3 : vector<10x1xf32> to vector<10x128xf32>
    %134 = arith.mulf %132, %133 : vector<10x128xf32>
    %135 = vector.broadcast %4 : vector<10x1xf32> to vector<10x128xf32>
    %136 = arith.addf %134, %135 : vector<10x128xf32>
    %cst_61 = arith.constant 0.000000e+00 : f32
    %137 = vector.broadcast %cst_61 : f32 to vector<10x128xf32>
    %138 = arith.cmpf oge, %136, %137 : vector<10x128xf32>
    %139 = vector.broadcast %5 : vector<10x1xf32> to vector<10x128xf32>
    %140 = arith.mulf %139, %136 : vector<10x128xf32>
    %141 = arith.select %138, %136, %140 : vector<10x128xi1>, vector<10x128xf32>
    %c0_62 = arith.constant 0 : index
    %c0_63 = arith.constant 0 : index
    %c0_64 = arith.constant 0 : index
    %142 = vector.load %arg9[%c0_62, %c0_63, %c0_64] : memref<1x8x10xbf16, #tpu.memory_space<vmem>>, vector<1x8x10xbf16>
    %143 = vector.shape_cast %142 : vector<1x8x10xbf16> to vector<8x10xbf16>
    %c0_65 = arith.constant 0 : index
    %c0_66 = arith.constant 0 : index
    %c0_67 = arith.constant 0 : index
    %144 = vector.load %arg10[%c0_65, %c0_66, %c0_67] : memref<1x10x232xbf16, #tpu.memory_space<vmem>>, vector<1x10x232xbf16>
    %145 = vector.shape_cast %144 : vector<1x10x232xbf16> to vector<10x232xbf16>
    %c0_68 = arith.constant 0 : index
    %c0_69 = arith.constant 0 : index
    %c0_70 = arith.constant 0 : index
    %146 = vector.load %arg11[%c0_68, %c0_69, %c0_70] : memref<1x10x1xf32, #tpu.memory_space<vmem>>, vector<1x10x1xf32>
    %147 = vector.shape_cast %146 : vector<1x10x1xf32> to vector<10x1xf32>
    %c0_71 = arith.constant 0 : index
    %c0_72 = arith.constant 0 : index
    %c0_73 = arith.constant 0 : index
    %148 = vector.load %arg12[%c0_71, %c0_72, %c0_73] : memref<1x10x1xf32, #tpu.memory_space<vmem>>, vector<1x10x1xf32>
    %149 = vector.shape_cast %148 : vector<1x10x1xf32> to vector<10x1xf32>
    %c0_74 = arith.constant 0 : index
    %c0_75 = arith.constant 0 : index
    %c0_76 = arith.constant 0 : index
    %150 = vector.load %arg13[%c0_74, %c0_75, %c0_76] : memref<1x10x1xf32, #tpu.memory_space<vmem>>, vector<1x10x1xf32>
    %151 = vector.shape_cast %150 : vector<1x10x1xf32> to vector<10x1xf32>
    %152 = arith.truncf %141 : vector<10x128xf32> to vector<10x128xbf16>
    %cst_77 = arith.constant dense<0.000000e+00> : vector<8x128xf32>
    %153 = tpu.matmul %143, %152, %cst_77 {dimension_numbers = #tpu.dot_dimension_numbers<[1], [0], [0], [1], [0, 0, 1, 1], [], []>} : vector<8x10xbf16>, vector<10x128xbf16>, vector<8x128xf32> -> vector<8x128xf32>
    %c9_i32_78 = arith.constant 9 : i32
    %154 = tpu.dynamic_rotate %153 by %c9_i32_78 dim 1 : vector<8x128xf32>, i32 -> vector<8x128xf32>
    %c0_79 = arith.constant 0 : index
    %c0_80 = arith.constant 0 : index
    %c0_81 = arith.constant 0 : index
    %155 = vector.load %arg3[%c0_79, %c0_80, %c0_81] : memref<29x1x128xf32, #tpu.memory_space<vmem>>, vector<1x1x128xf32>
    %156 = vector.shape_cast %155 : vector<1x1x128xf32> to vector<1x128xf32>
    %157 = vector.broadcast %156 : vector<1x128xf32> to vector<8x128xf32>
    %158 = arith.mulf %154, %157 : vector<8x128xf32>
    %c8_i32_82 = arith.constant 8 : i32
    %159 = tpu.dynamic_rotate %153 by %c8_i32_82 dim 1 : vector<8x128xf32>, i32 -> vector<8x128xf32>
    %c1_83 = arith.constant 1 : index
    %c0_84 = arith.constant 0 : index
    %c0_85 = arith.constant 0 : index
    %160 = vector.load %arg3[%c1_83, %c0_84, %c0_85] : memref<29x1x128xf32, #tpu.memory_space<vmem>>, vector<1x1x128xf32>
    %161 = vector.shape_cast %160 : vector<1x1x128xf32> to vector<1x128xf32>
    %162 = vector.broadcast %161 : vector<1x128xf32> to vector<8x128xf32>
    %163 = arith.mulf %159, %162 : vector<8x128xf32>
    %c7_i32_86 = arith.constant 7 : i32
    %164 = tpu.dynamic_rotate %153 by %c7_i32_86 dim 1 : vector<8x128xf32>, i32 -> vector<8x128xf32>
    %c2_87 = arith.constant 2 : index
    %c0_88 = arith.constant 0 : index
    %c0_89 = arith.constant 0 : index
    %165 = vector.load %arg3[%c2_87, %c0_88, %c0_89] : memref<29x1x128xf32, #tpu.memory_space<vmem>>, vector<1x1x128xf32>
    %166 = vector.shape_cast %165 : vector<1x1x128xf32> to vector<1x128xf32>
    %167 = vector.broadcast %166 : vector<1x128xf32> to vector<8x128xf32>
    %168 = arith.mulf %164, %167 : vector<8x128xf32>
    %c1_i32_90 = arith.constant 1 : i32
    %169 = tpu.dynamic_rotate %153 by %c1_i32_90 dim 1 : vector<8x128xf32>, i32 -> vector<8x128xf32>
    %c3_91 = arith.constant 3 : index
    %c0_92 = arith.constant 0 : index
    %c0_93 = arith.constant 0 : index
    %170 = vector.load %arg3[%c3_91, %c0_92, %c0_93] : memref<29x1x128xf32, #tpu.memory_space<vmem>>, vector<1x1x128xf32>
    %171 = vector.shape_cast %170 : vector<1x1x128xf32> to vector<1x128xf32>
    %172 = vector.broadcast %171 : vector<1x128xf32> to vector<8x128xf32>
    %173 = arith.mulf %169, %172 : vector<8x128xf32>
    %c127_i32_94 = arith.constant 127 : i32
    %174 = tpu.dynamic_rotate %153 by %c127_i32_94 dim 1 : vector<8x128xf32>, i32 -> vector<8x128xf32>
    %c5_95 = arith.constant 5 : index
    %c0_96 = arith.constant 0 : index
    %c0_97 = arith.constant 0 : index
    %175 = vector.load %arg3[%c5_95, %c0_96, %c0_97] : memref<29x1x128xf32, #tpu.memory_space<vmem>>, vector<1x1x128xf32>
    %176 = vector.shape_cast %175 : vector<1x1x128xf32> to vector<1x128xf32>
    %177 = vector.broadcast %176 : vector<1x128xf32> to vector<8x128xf32>
    %178 = arith.mulf %174, %177 : vector<8x128xf32>
    %c121_i32_98 = arith.constant 121 : i32
    %179 = tpu.dynamic_rotate %153 by %c121_i32_98 dim 1 : vector<8x128xf32>, i32 -> vector<8x128xf32>
    %c6_99 = arith.constant 6 : index
    %c0_100 = arith.constant 0 : index
    %c0_101 = arith.constant 0 : index
    %180 = vector.load %arg3[%c6_99, %c0_100, %c0_101] : memref<29x1x128xf32, #tpu.memory_space<vmem>>, vector<1x1x128xf32>
    %181 = vector.shape_cast %180 : vector<1x1x128xf32> to vector<1x128xf32>
    %182 = vector.broadcast %181 : vector<1x128xf32> to vector<8x128xf32>
    %183 = arith.mulf %179, %182 : vector<8x128xf32>
    %c120_i32_102 = arith.constant 120 : i32
    %184 = tpu.dynamic_rotate %153 by %c120_i32_102 dim 1 : vector<8x128xf32>, i32 -> vector<8x128xf32>
    %c7_103 = arith.constant 7 : index
    %c0_104 = arith.constant 0 : index
    %c0_105 = arith.constant 0 : index
    %185 = vector.load %arg3[%c7_103, %c0_104, %c0_105] : memref<29x1x128xf32, #tpu.memory_space<vmem>>, vector<1x1x128xf32>
    %186 = vector.shape_cast %185 : vector<1x1x128xf32> to vector<1x128xf32>
    %187 = vector.broadcast %186 : vector<1x128xf32> to vector<8x128xf32>
    %188 = arith.mulf %184, %187 : vector<8x128xf32>
    %c119_i32_106 = arith.constant 119 : i32
    %189 = tpu.dynamic_rotate %153 by %c119_i32_106 dim 1 : vector<8x128xf32>, i32 -> vector<8x128xf32>
    %c8_107 = arith.constant 8 : index
    %c0_108 = arith.constant 0 : index
    %c0_109 = arith.constant 0 : index
    %190 = vector.load %arg3[%c8_107, %c0_108, %c0_109] : memref<29x1x128xf32, #tpu.memory_space<vmem>>, vector<1x1x128xf32>
    %191 = vector.shape_cast %190 : vector<1x1x128xf32> to vector<1x128xf32>
    %192 = vector.broadcast %191 : vector<1x128xf32> to vector<8x128xf32>
    %193 = arith.mulf %189, %192 : vector<8x128xf32>
    %c18_i32_110 = arith.constant 18 : i32
    %194 = tpu.dynamic_rotate %153 by %c18_i32_110 dim 1 : vector<8x128xf32>, i32 -> vector<8x128xf32>
    %c9_111 = arith.constant 9 : index
    %c0_112 = arith.constant 0 : index
    %c0_113 = arith.constant 0 : index
    %195 = vector.load %arg3[%c9_111, %c0_112, %c0_113] : memref<29x1x128xf32, #tpu.memory_space<vmem>>, vector<1x1x128xf32>
    %196 = vector.shape_cast %195 : vector<1x1x128xf32> to vector<1x128xf32>
    %197 = vector.broadcast %196 : vector<1x128xf32> to vector<8x128xf32>
    %198 = arith.mulf %194, %197 : vector<8x128xf32>
    %c16_i32_114 = arith.constant 16 : i32
    %199 = tpu.dynamic_rotate %153 by %c16_i32_114 dim 1 : vector<8x128xf32>, i32 -> vector<8x128xf32>
    %c10_115 = arith.constant 10 : index
    %c0_116 = arith.constant 0 : index
    %c0_117 = arith.constant 0 : index
    %200 = vector.load %arg3[%c10_115, %c0_116, %c0_117] : memref<29x1x128xf32, #tpu.memory_space<vmem>>, vector<1x1x128xf32>
    %201 = vector.shape_cast %200 : vector<1x1x128xf32> to vector<1x128xf32>
    %202 = vector.broadcast %201 : vector<1x128xf32> to vector<8x128xf32>
    %203 = arith.mulf %199, %202 : vector<8x128xf32>
    %c14_i32_118 = arith.constant 14 : i32
    %204 = tpu.dynamic_rotate %153 by %c14_i32_118 dim 1 : vector<8x128xf32>, i32 -> vector<8x128xf32>
    %c11_119 = arith.constant 11 : index
    %c0_120 = arith.constant 0 : index
    %c0_121 = arith.constant 0 : index
    %205 = vector.load %arg3[%c11_119, %c0_120, %c0_121] : memref<29x1x128xf32, #tpu.memory_space<vmem>>, vector<1x1x128xf32>
    %206 = vector.shape_cast %205 : vector<1x1x128xf32> to vector<1x128xf32>
    %207 = vector.broadcast %206 : vector<1x128xf32> to vector<8x128xf32>
    %208 = arith.mulf %204, %207 : vector<8x128xf32>
    %c2_i32_122 = arith.constant 2 : i32
    %209 = tpu.dynamic_rotate %153 by %c2_i32_122 dim 1 : vector<8x128xf32>, i32 -> vector<8x128xf32>
    %c12_123 = arith.constant 12 : index
    %c0_124 = arith.constant 0 : index
    %c0_125 = arith.constant 0 : index
    %210 = vector.load %arg3[%c12_123, %c0_124, %c0_125] : memref<29x1x128xf32, #tpu.memory_space<vmem>>, vector<1x1x128xf32>
    %211 = vector.shape_cast %210 : vector<1x1x128xf32> to vector<1x128xf32>
    %212 = vector.broadcast %211 : vector<1x128xf32> to vector<8x128xf32>
    %213 = arith.mulf %209, %212 : vector<8x128xf32>
    %c126_i32_126 = arith.constant 126 : i32
    %214 = tpu.dynamic_rotate %153 by %c126_i32_126 dim 1 : vector<8x128xf32>, i32 -> vector<8x128xf32>
    %c14_127 = arith.constant 14 : index
    %c0_128 = arith.constant 0 : index
    %c0_129 = arith.constant 0 : index
    %215 = vector.load %arg3[%c14_127, %c0_128, %c0_129] : memref<29x1x128xf32, #tpu.memory_space<vmem>>, vector<1x1x128xf32>
    %216 = vector.shape_cast %215 : vector<1x1x128xf32> to vector<1x128xf32>
    %217 = vector.broadcast %216 : vector<1x128xf32> to vector<8x128xf32>
    %218 = arith.mulf %214, %217 : vector<8x128xf32>
    %c114_i32_130 = arith.constant 114 : i32
    %219 = tpu.dynamic_rotate %153 by %c114_i32_130 dim 1 : vector<8x128xf32>, i32 -> vector<8x128xf32>
    %c15_131 = arith.constant 15 : index
    %c0_132 = arith.constant 0 : index
    %c0_133 = arith.constant 0 : index
    %220 = vector.load %arg3[%c15_131, %c0_132, %c0_133] : memref<29x1x128xf32, #tpu.memory_space<vmem>>, vector<1x1x128xf32>
    %221 = vector.shape_cast %220 : vector<1x1x128xf32> to vector<1x128xf32>
    %222 = vector.broadcast %221 : vector<1x128xf32> to vector<8x128xf32>
    %223 = arith.mulf %219, %222 : vector<8x128xf32>
    %c112_i32_134 = arith.constant 112 : i32
    %224 = tpu.dynamic_rotate %153 by %c112_i32_134 dim 1 : vector<8x128xf32>, i32 -> vector<8x128xf32>
    %c16_135 = arith.constant 16 : index
    %c0_136 = arith.constant 0 : index
    %c0_137 = arith.constant 0 : index
    %225 = vector.load %arg3[%c16_135, %c0_136, %c0_137] : memref<29x1x128xf32, #tpu.memory_space<vmem>>, vector<1x1x128xf32>
    %226 = vector.shape_cast %225 : vector<1x1x128xf32> to vector<1x128xf32>
    %227 = vector.broadcast %226 : vector<1x128xf32> to vector<8x128xf32>
    %228 = arith.mulf %224, %227 : vector<8x128xf32>
    %c110_i32_138 = arith.constant 110 : i32
    %229 = tpu.dynamic_rotate %153 by %c110_i32_138 dim 1 : vector<8x128xf32>, i32 -> vector<8x128xf32>
    %c17_139 = arith.constant 17 : index
    %c0_140 = arith.constant 0 : index
    %c0_141 = arith.constant 0 : index
    %230 = vector.load %arg3[%c17_139, %c0_140, %c0_141] : memref<29x1x128xf32, #tpu.memory_space<vmem>>, vector<1x1x128xf32>
    %231 = vector.shape_cast %230 : vector<1x1x128xf32> to vector<1x128xf32>
    %232 = vector.broadcast %231 : vector<1x128xf32> to vector<8x128xf32>
    %233 = arith.mulf %229, %232 : vector<8x128xf32>
    %c36_i32_142 = arith.constant 36 : i32
    %234 = tpu.dynamic_rotate %153 by %c36_i32_142 dim 1 : vector<8x128xf32>, i32 -> vector<8x128xf32>
    %c18_143 = arith.constant 18 : index
    %c0_144 = arith.constant 0 : index
    %c0_145 = arith.constant 0 : index
    %235 = vector.load %arg3[%c18_143, %c0_144, %c0_145] : memref<29x1x128xf32, #tpu.memory_space<vmem>>, vector<1x1x128xf32>
    %236 = vector.shape_cast %235 : vector<1x1x128xf32> to vector<1x128xf32>
    %237 = vector.broadcast %236 : vector<1x128xf32> to vector<8x128xf32>
    %238 = arith.mulf %234, %237 : vector<8x128xf32>
    %c32_i32_146 = arith.constant 32 : i32
    %239 = tpu.dynamic_rotate %153 by %c32_i32_146 dim 1 : vector<8x128xf32>, i32 -> vector<8x128xf32>
    %c19_147 = arith.constant 19 : index
    %c0_148 = arith.constant 0 : index
    %c0_149 = arith.constant 0 : index
    %240 = vector.load %arg3[%c19_147, %c0_148, %c0_149] : memref<29x1x128xf32, #tpu.memory_space<vmem>>, vector<1x1x128xf32>
    %241 = vector.shape_cast %240 : vector<1x1x128xf32> to vector<1x128xf32>
    %242 = vector.broadcast %241 : vector<1x128xf32> to vector<8x128xf32>
    %243 = arith.mulf %239, %242 : vector<8x128xf32>
    %c28_i32_150 = arith.constant 28 : i32
    %244 = tpu.dynamic_rotate %153 by %c28_i32_150 dim 1 : vector<8x128xf32>, i32 -> vector<8x128xf32>
    %c20_151 = arith.constant 20 : index
    %c0_152 = arith.constant 0 : index
    %c0_153 = arith.constant 0 : index
    %245 = vector.load %arg3[%c20_151, %c0_152, %c0_153] : memref<29x1x128xf32, #tpu.memory_space<vmem>>, vector<1x1x128xf32>
    %246 = vector.shape_cast %245 : vector<1x1x128xf32> to vector<1x128xf32>
    %247 = vector.broadcast %246 : vector<1x128xf32> to vector<8x128xf32>
    %248 = arith.mulf %244, %247 : vector<8x128xf32>
    %c4_i32_154 = arith.constant 4 : i32
    %249 = tpu.dynamic_rotate %153 by %c4_i32_154 dim 1 : vector<8x128xf32>, i32 -> vector<8x128xf32>
    %c21_155 = arith.constant 21 : index
    %c0_156 = arith.constant 0 : index
    %c0_157 = arith.constant 0 : index
    %250 = vector.load %arg3[%c21_155, %c0_156, %c0_157] : memref<29x1x128xf32, #tpu.memory_space<vmem>>, vector<1x1x128xf32>
    %251 = vector.shape_cast %250 : vector<1x1x128xf32> to vector<1x128xf32>
    %252 = vector.broadcast %251 : vector<1x128xf32> to vector<8x128xf32>
    %253 = arith.mulf %249, %252 : vector<8x128xf32>
    %c124_i32_158 = arith.constant 124 : i32
    %254 = tpu.dynamic_rotate %153 by %c124_i32_158 dim 1 : vector<8x128xf32>, i32 -> vector<8x128xf32>
    %c23_159 = arith.constant 23 : index
    %c0_160 = arith.constant 0 : index
    %c0_161 = arith.constant 0 : index
    %255 = vector.load %arg3[%c23_159, %c0_160, %c0_161] : memref<29x1x128xf32, #tpu.memory_space<vmem>>, vector<1x1x128xf32>
    %256 = vector.shape_cast %255 : vector<1x1x128xf32> to vector<1x128xf32>
    %257 = vector.broadcast %256 : vector<1x128xf32> to vector<8x128xf32>
    %258 = arith.mulf %254, %257 : vector<8x128xf32>
    %c100_i32_162 = arith.constant 100 : i32
    %259 = tpu.dynamic_rotate %153 by %c100_i32_162 dim 1 : vector<8x128xf32>, i32 -> vector<8x128xf32>
    %c24_163 = arith.constant 24 : index
    %c0_164 = arith.constant 0 : index
    %c0_165 = arith.constant 0 : index
    %260 = vector.load %arg3[%c24_163, %c0_164, %c0_165] : memref<29x1x128xf32, #tpu.memory_space<vmem>>, vector<1x1x128xf32>
    %261 = vector.shape_cast %260 : vector<1x1x128xf32> to vector<1x128xf32>
    %262 = vector.broadcast %261 : vector<1x128xf32> to vector<8x128xf32>
    %263 = arith.mulf %259, %262 : vector<8x128xf32>
    %c96_i32_166 = arith.constant 96 : i32
    %264 = tpu.dynamic_rotate %153 by %c96_i32_166 dim 1 : vector<8x128xf32>, i32 -> vector<8x128xf32>
    %c25_167 = arith.constant 25 : index
    %c0_168 = arith.constant 0 : index
    %c0_169 = arith.constant 0 : index
    %265 = vector.load %arg3[%c25_167, %c0_168, %c0_169] : memref<29x1x128xf32, #tpu.memory_space<vmem>>, vector<1x1x128xf32>
    %266 = vector.shape_cast %265 : vector<1x1x128xf32> to vector<1x128xf32>
    %267 = vector.broadcast %266 : vector<1x128xf32> to vector<8x128xf32>
    %268 = arith.mulf %264, %267 : vector<8x128xf32>
    %c92_i32_170 = arith.constant 92 : i32
    %269 = tpu.dynamic_rotate %153 by %c92_i32_170 dim 1 : vector<8x128xf32>, i32 -> vector<8x128xf32>
    %c26_171 = arith.constant 26 : index
    %c0_172 = arith.constant 0 : index
    %c0_173 = arith.constant 0 : index
    %270 = vector.load %arg3[%c26_171, %c0_172, %c0_173] : memref<29x1x128xf32, #tpu.memory_space<vmem>>, vector<1x1x128xf32>
    %271 = vector.shape_cast %270 : vector<1x1x128xf32> to vector<1x128xf32>
    %272 = vector.broadcast %271 : vector<1x128xf32> to vector<8x128xf32>
    %273 = arith.mulf %269, %272 : vector<8x128xf32>
    %274 = tpu.concatenate %158, %163, %168, %173, %153, %178, %183, %188, %193, %198, %203, %208, %213, %153, %218, %223 in 0 : vector<8x128xf32>, vector<8x128xf32>, vector<8x128xf32>, vector<8x128xf32>, vector<8x128xf32>, vector<8x128xf32>, vector<8x128xf32>, vector<8x128xf32>, vector<8x128xf32>, vector<8x128xf32>, vector<8x128xf32>, vector<8x128xf32>, vector<8x128xf32>, vector<8x128xf32>, vector<8x128xf32>, vector<8x128xf32> -> vector<128x128xf32>
    %275 = tpu.concatenate %228, %233, %238, %243, %248, %253, %153, %258, %263, %268, %273, %153, %153 in 0 : vector<8x128xf32>, vector<8x128xf32>, vector<8x128xf32>, vector<8x128xf32>, vector<8x128xf32>, vector<8x128xf32>, vector<8x128xf32>, vector<8x128xf32>, vector<8x128xf32>, vector<8x128xf32>, vector<8x128xf32>, vector<8x128xf32>, vector<8x128xf32> -> vector<104x128xf32>
    %276 = tpu.concatenate %274, %275 in 0 : vector<128x128xf32>, vector<104x128xf32> -> vector<232x128xf32>
    %277 = arith.truncf %276 : vector<232x128xf32> to vector<232x128xbf16>
    %cst_174 = arith.constant dense<0.000000e+00> : vector<10x128xf32>
    %278 = tpu.matmul %145, %277, %cst_174 {dimension_numbers = #tpu.dot_dimension_numbers<[1], [0], [0], [1], [0, 0, 1, 1], [], []>} : vector<10x232xbf16>, vector<232x128xbf16>, vector<10x128xf32> -> vector<10x128xf32>
    %279 = arith.addf %278, %141 : vector<10x128xf32>
    %280 = vector.broadcast %147 : vector<10x1xf32> to vector<10x128xf32>
    %281 = arith.mulf %279, %280 : vector<10x128xf32>
    %282 = vector.broadcast %149 : vector<10x1xf32> to vector<10x128xf32>
    %283 = arith.addf %281, %282 : vector<10x128xf32>
    %cst_175 = arith.constant 0.000000e+00 : f32
    %284 = vector.broadcast %cst_175 : f32 to vector<10x128xf32>
    %285 = arith.cmpf oge, %283, %284 : vector<10x128xf32>
    %286 = vector.broadcast %151 : vector<10x1xf32> to vector<10x128xf32>
    %287 = arith.mulf %286, %283 : vector<10x128xf32>
    %288 = arith.select %285, %283, %287 : vector<10x128xi1>, vector<10x128xf32>
    %c0_176 = arith.constant 0 : index
    %c0_177 = arith.constant 0 : index
    %289 = vector.load %arg14[%c0_176, %c0_177] : memref<4x36xf32, #tpu.memory_space<vmem>>, vector<4x36xf32>
    %c0_178 = arith.constant 0 : index
    %c0_179 = arith.constant 0 : index
    %290 = vector.load %arg2[%c0_178, %c0_179] : memref<36x128xf32, #tpu.memory_space<vmem>>, vector<36x128xf32>
    %cst_180 = arith.constant dense<0.000000e+00> : vector<4x128xf32>
    %291 = tpu.matmul %289, %290, %cst_180 {dimension_numbers = #tpu.dot_dimension_numbers<[1], [0], [0], [1], [0, 0, 1, 1], [], []>} : vector<4x36xf32>, vector<36x128xf32>, vector<4x128xf32> -> vector<4x128xf32>
    %c0_181 = arith.constant 0 : index
    %c0_182 = arith.constant 0 : index
    %292 = vector.load %arg21[%c0_181, %c0_182] : memref<4x128xf32, #tpu.memory_space<vmem>>, vector<4x128xf32>
    tpu.vector_store %arg21[%c0_181, %c0_182], %291 {strides = array<i32>} : memref<4x128xf32, #tpu.memory_space<vmem>>, vector<4x128xf32>,
    %c0_183 = arith.constant 0 : index
    %c0_184 = arith.constant 0 : index
    %293 = vector.load %arg15[%c0_183, %c0_184] : memref<24x1xf32, #tpu.memory_space<vmem>>, vector<10x1xf32>
    %c0_185 = arith.constant 0 : index
    %c0_186 = arith.constant 0 : index
    %294 = vector.load %arg16[%c0_185, %c0_186] : memref<24x1xf32, #tpu.memory_space<vmem>>, vector<10x1xf32>
    %c0_187 = arith.constant 0 : index
    %c0_188 = arith.constant 0 : index
    %295 = vector.load %arg17[%c0_187, %c0_188] : memref<24x1xf32, #tpu.memory_space<vmem>>, vector<10x1xf32>
    %296 = vector.broadcast %293 : vector<10x1xf32> to vector<10x128xf32>
    %297 = arith.mulf %288, %296 : vector<10x128xf32>
    %298 = vector.broadcast %294 : vector<10x1xf32> to vector<10x128xf32>
    %299 = arith.addf %297, %298 : vector<10x128xf32>
    %cst_189 = arith.constant 0.000000e+00 : f32
    %300 = vector.broadcast %cst_189 : f32 to vector<10x128xf32>
    %301 = arith.cmpf oge, %299, %300 : vector<10x128xf32>
    %302 = vector.broadcast %295 : vector<10x1xf32> to vector<10x128xf32>
    %303 = arith.mulf %302, %299 : vector<10x128xf32>
    %304 = arith.select %301, %299, %303 : vector<10x128xi1>, vector<10x128xf32>
    %c0_190 = arith.constant 0 : index
    %c0_191 = arith.constant 0 : index
    %305 = vector.load %arg18[%c0_190, %c0_191] : memref<10x128xf32, #tpu.memory_space<vmem>>, vector<10x128xf32>
    tpu.vector_store %arg18[%c0_190, %c0_191], %304 {strides = array<i32>} : memref<10x128xf32, #tpu.memory_space<vmem>>, vector<10x128xf32>,
    %c10_192 = arith.constant 10 : index
    %c0_193 = arith.constant 0 : index
    %306 = vector.load %arg15[%c10_192, %c0_193] : memref<24x1xf32, #tpu.memory_space<vmem>>, vector<10x1xf32>
    %c10_194 = arith.constant 10 : index
    %c0_195 = arith.constant 0 : index
    %307 = vector.load %arg16[%c10_194, %c0_195] : memref<24x1xf32, #tpu.memory_space<vmem>>, vector<10x1xf32>
    %c10_196 = arith.constant 10 : index
    %c0_197 = arith.constant 0 : index
    %308 = vector.load %arg17[%c10_196, %c0_197] : memref<24x1xf32, #tpu.memory_space<vmem>>, vector<10x1xf32>
    %309 = vector.broadcast %306 : vector<10x1xf32> to vector<10x128xf32>
    %310 = arith.mulf %141, %309 : vector<10x128xf32>
    %311 = vector.broadcast %307 : vector<10x1xf32> to vector<10x128xf32>
    %312 = arith.addf %310, %311 : vector<10x128xf32>
    %cst_198 = arith.constant 0.000000e+00 : f32
    %313 = vector.broadcast %cst_198 : f32 to vector<10x128xf32>
    %314 = arith.cmpf oge, %312, %313 : vector<10x128xf32>
    %315 = vector.broadcast %308 : vector<10x1xf32> to vector<10x128xf32>
    %316 = arith.mulf %315, %312 : vector<10x128xf32>
    %317 = arith.select %314, %312, %316 : vector<10x128xi1>, vector<10x128xf32>
    %c0_199 = arith.constant 0 : index
    %c0_200 = arith.constant 0 : index
    %318 = vector.load %arg19[%c0_199, %c0_200] : memref<10x128xf32, #tpu.memory_space<vmem>>, vector<10x128xf32>
    tpu.vector_store %arg19[%c0_199, %c0_200], %317 {strides = array<i32>} : memref<10x128xf32, #tpu.memory_space<vmem>>, vector<10x128xf32>,
    %c20_201 = arith.constant 20 : index
    %c0_202 = arith.constant 0 : index
    %319 = vector.load %arg15[%c20_201, %c0_202] : memref<24x1xf32, #tpu.memory_space<vmem>>, vector<4x1xf32>
    %c20_203 = arith.constant 20 : index
    %c0_204 = arith.constant 0 : index
    %320 = vector.load %arg16[%c20_203, %c0_204] : memref<24x1xf32, #tpu.memory_space<vmem>>, vector<4x1xf32>
    %c20_205 = arith.constant 20 : index
    %c0_206 = arith.constant 0 : index
    %321 = vector.load %arg17[%c20_205, %c0_206] : memref<24x1xf32, #tpu.memory_space<vmem>>, vector<4x1xf32>
    %322 = vector.broadcast %319 : vector<4x1xf32> to vector<4x128xf32>
    %323 = arith.mulf %291, %322 : vector<4x128xf32>
    %324 = vector.broadcast %320 : vector<4x1xf32> to vector<4x128xf32>
    %325 = arith.addf %323, %324 : vector<4x128xf32>
    %cst_207 = arith.constant 0.000000e+00 : f32
    %326 = vector.broadcast %cst_207 : f32 to vector<4x128xf32>
    %327 = arith.cmpf oge, %325, %326 : vector<4x128xf32>
    %328 = vector.broadcast %321 : vector<4x1xf32> to vector<4x128xf32>
    %329 = arith.mulf %328, %325 : vector<4x128xf32>
    %330 = arith.select %327, %325, %329 : vector<4x128xi1>, vector<4x128xf32>
    %c0_208 = arith.constant 0 : index
    %c0_209 = arith.constant 0 : index
    %331 = vector.load %arg20[%c0_208, %c0_209] : memref<4x128xf32, #tpu.memory_space<vmem>>, vector<4x128xf32>
    tpu.vector_store %arg20[%c0_208, %c0_209], %330 {strides = array<i32>} : memref<4x128xf32, #tpu.memory_space<vmem>>, vector<4x128xf32>,
    return
  }
  func.func @transform_0(%arg0: i32) -> (i32, i32) {
    %c0_i32 = arith.constant 0 : i32
    %c0_i32_0 = arith.constant 0 : i32
    %c0_i32_1 = arith.constant 0 : i32
    return %c0_i32, %c0_i32_0 : i32, i32
  }
  func.func @transform_1(%arg0: i32) -> (i32, i32) {
    %c0_i32 = arith.constant 0 : i32
    %c0_i32_0 = arith.constant 0 : i32
    %c0_i32_1 = arith.constant 0 : i32
    return %c0_i32, %c0_i32_0 : i32, i32
  }
  func.func @transform_2(%arg0: i32) -> (i32, i32, i32) {
    %c0_i32 = arith.constant 0 : i32
    %c0_i32_0 = arith.constant 0 : i32
    %c0_i32_1 = arith.constant 0 : i32
    %c0_i32_2 = arith.constant 0 : i32
    return %c0_i32, %c0_i32_0, %c0_i32_1 : i32, i32, i32
  }
  func.func @transform_3(%arg0: i32) -> (i32, i32) {
    %c0_i32 = arith.constant 0 : i32
    %c0_i32_0 = arith.constant 0 : i32
    %c0_i32_1 = arith.constant 0 : i32
    return %c0_i32, %c0_i32_0 : i32, i32
  }
  func.func @transform_4(%arg0: i32) -> (i32, i32) {
    %c0_i32 = arith.constant 0 : i32
    %c0_i32_0 = arith.constant 0 : i32
    %c0_i32_1 = arith.constant 0 : i32
    return %c0_i32, %c0_i32_0 : i32, i32
  }
  func.func @transform_5(%arg0: i32) -> (i32, i32) {
    %c0_i32 = arith.constant 0 : i32
    %c0_i32_0 = arith.constant 0 : i32
    %c0_i32_1 = arith.constant 0 : i32
    return %c0_i32, %c0_i32_0 : i32, i32
  }
  func.func @transform_6(%arg0: i32) -> (i32, i32) {
    %c0_i32 = arith.constant 0 : i32
    %c0_i32_0 = arith.constant 0 : i32
    %c0_i32_1 = arith.constant 0 : i32
    return %c0_i32, %c0_i32_0 : i32, i32
  }
  func.func @transform_7(%arg0: i32) -> (i32, i32) {
    %c0_i32 = arith.constant 0 : i32
    %c0_i32_0 = arith.constant 0 : i32
    %c0_i32_1 = arith.constant 0 : i32
    return %c0_i32, %c0_i32_0 : i32, i32
  }
  func.func @transform_8(%arg0: i32) -> (i32, i32, i32) {
    %c0_i32 = arith.constant 0 : i32
    %c0_i32_0 = arith.constant 0 : i32
    %c0_i32_1 = arith.constant 0 : i32
    %c0_i32_2 = arith.constant 0 : i32
    return %c0_i32, %c0_i32_0, %c0_i32_1 : i32, i32, i32
  }
  func.func @transform_9(%arg0: i32) -> (i32, i32, i32) {
    %c0_i32 = arith.constant 0 : i32
    %c0_i32_0 = arith.constant 0 : i32
    %c0_i32_1 = arith.constant 0 : i32
    %c0_i32_2 = arith.constant 0 : i32
    return %c0_i32, %c0_i32_0, %c0_i32_1 : i32, i32, i32
  }
  func.func @transform_10(%arg0: i32) -> (i32, i32, i32) {
    %c0_i32 = arith.constant 0 : i32
    %c0_i32_0 = arith.constant 0 : i32
    %c0_i32_1 = arith.constant 0 : i32
    %c0_i32_2 = arith.constant 0 : i32
    return %c0_i32, %c0_i32_0, %c0_i32_1 : i32, i32, i32
  }
  func.func @transform_11(%arg0: i32) -> (i32, i32, i32) {
    %c0_i32 = arith.constant 0 : i32
    %c0_i32_0 = arith.constant 0 : i32
    %c0_i32_1 = arith.constant 0 : i32
    %c0_i32_2 = arith.constant 0 : i32
    return %c0_i32, %c0_i32_0, %c0_i32_1 : i32, i32, i32
  }
  func.func @transform_12(%arg0: i32) -> (i32, i32, i32) {
    %c0_i32 = arith.constant 0 : i32
    %c0_i32_0 = arith.constant 0 : i32
    %c0_i32_1 = arith.constant 0 : i32
    %c0_i32_2 = arith.constant 0 : i32
    return %c0_i32, %c0_i32_0, %c0_i32_1 : i32, i32, i32
  }
  func.func @transform_13(%arg0: i32) -> (i32, i32) {
    %c0_i32 = arith.constant 0 : i32
    %c0_i32_0 = arith.constant 0 : i32
    %c0_i32_1 = arith.constant 0 : i32
    return %c0_i32, %c0_i32_0 : i32, i32
  }
  func.func @transform_14(%arg0: i32) -> (i32, i32) {
    %c0_i32 = arith.constant 0 : i32
    %c0_i32_0 = arith.constant 0 : i32
    %c0_i32_1 = arith.constant 0 : i32
    return %c0_i32, %c0_i32_0 : i32, i32
  }
  func.func @transform_15(%arg0: i32) -> (i32, i32) {
    %c0_i32 = arith.constant 0 : i32
    %c0_i32_0 = arith.constant 0 : i32
    %c0_i32_1 = arith.constant 0 : i32
    return %c0_i32, %c0_i32_0 : i32, i32
  }
  func.func @transform_16(%arg0: i32) -> (i32, i32) {
    %c0_i32 = arith.constant 0 : i32
    %c0_i32_0 = arith.constant 0 : i32
    %c0_i32_1 = arith.constant 0 : i32
    return %c0_i32, %c0_i32_0 : i32, i32
  }
  func.func @transform_17(%arg0: i32) -> (i32, i32) {
    %c0_i32 = arith.constant 0 : i32
    %c0_i32_0 = arith.constant 0 : i32
    %c0_i32_1 = arith.constant 0 : i32
    return %c0_i32, %c0_i32_0 : i32, i32
  }
  func.func @transform_18(%arg0: i32) -> (i32, i32) {
    %c0_i32 = arith.constant 0 : i32
    %c0_i32_0 = arith.constant 0 : i32
    %c0_i32_1 = arith.constant 0 : i32
    return %c0_i32, %c0_i32_0 : i32, i32
  }
  func.func @transform_19(%arg0: i32) -> (i32, i32) {
    %c0_i32 = arith.constant 0 : i32
    %c0_i32_0 = arith.constant 0 : i32
    %c0_i32_1 = arith.constant 0 : i32
    return %c0_i32, %c0_i32_0 : i32, i32
  }
  func.func @transform_20(%arg0: i32) -> (i32, i32) {
    %c0_i32 = arith.constant 0 : i32
    %c0_i32_0 = arith.constant 0 : i32
    %c0_i32_1 = arith.constant 0 : i32
    return %c0_i32, %c0_i32_0 : i32, i32
  }
}

</mosaic_0001>

<llo_original>
// kernel: _lambda_.1
$region0: #{_lambda_.1}
  #allocation0 [shape = 'u32[]', space=smem, size = 0x4, offset = 0x4, fixed_abs, tag = 'smem constant byte address 0x4 - core index']
  #allocation1 [shape = 'u32[144,128]{1,0:T(1,128)}', space=vmem, size = 0x12000, scoped, tag = 'internal scratch']
  %s0 = inlined_call_operand.vmem [shape: f32[72,128], index: 0, kind: input, shape index: {}]
  %s1 = inlined_call_operand.vmem [shape: f32[36,128], index: 1, kind: input, shape index: {}]
  %s2 = inlined_call_operand.vmem [shape: f32[29,1,128], index: 2, kind: input, shape index: {}]
  %s3 = inlined_call_operand.vmem [shape: bf16[8,72], index: 3, kind: input, shape index: {}]
  %s4 = inlined_call_operand.vmem [shape: bf16[10,232], index: 4, kind: input, shape index: {}]
  %s5 = inlined_call_operand.vmem [shape: f32[10,1], index: 5, kind: input, shape index: {}]
  %s6 = inlined_call_operand.vmem [shape: f32[10,1], index: 6, kind: input, shape index: {}]
  %s7 = inlined_call_operand.vmem [shape: f32[10,1], index: 7, kind: input, shape index: {}]
  %s8 = inlined_call_operand.vmem [shape: bf16[1,8,10], index: 8, kind: input, shape index: {}]
  %s9 = inlined_call_operand.vmem [shape: bf16[1,10,232], index: 9, kind: input, shape index: {}]
  %s10 = inlined_call_operand.vmem [shape: f32[1,10,1], index: 10, kind: input, shape index: {}]
  %s11 = inlined_call_operand.vmem [shape: f32[1,10,1], index: 11, kind: input, shape index: {}]
  %s12 = inlined_call_operand.vmem [shape: f32[1,10,1], index: 12, kind: input, shape index: {}]
  %s13 = inlined_call_operand.vmem [shape: f32[4,36], index: 13, kind: input, shape index: {}]
  %s14 = inlined_call_operand.vmem [shape: f32[24,1], index: 14, kind: input, shape index: {}]
  %s15 = inlined_call_operand.vmem [shape: f32[24,1], index: 15, kind: input, shape index: {}]
  %s16 = inlined_call_operand.vmem [shape: f32[24,1], index: 16, kind: input, shape index: {}]
  %s17 = inlined_call_operand.vmem [shape: f32[10,128], index: 17, kind: output, shape index: {0}]
  %s18 = inlined_call_operand.vmem [shape: f32[10,128], index: 18, kind: output, shape index: {1}]
  %s19 = inlined_call_operand.vmem [shape: f32[4,128], index: 19, kind: output, shape index: {2}]
  %s20 = inlined_call_operand.vmem [shape: f32[4,128], index: 20, kind: output, shape index: {3}]
  %21 = xla_tuple %s17, %s18, %s19, %s20
  %s22 = sld [smem:[#allocation0]]
  $region102: #{_lambda_.1} parent=0
    _
  %s24 = ssub.s32 1, %s22
  %s25 = scalar_select 0, %s24, %s22
  // Predicated region
  $region2: #{_lambda_.1} parent=0 // pred_check
    _
  $region3: #{_lambda_.1} parent=0 // pred_check_branch
    %27 = sbr.rel (0) target = $region5
  $region4: #{_lambda_.1} parent=0 // pred_region
    _
  $region5: #{_lambda_.1} parent=0 // pred_fallthru
    _
  // Predicated region
  $region6: #{_lambda_.1} parent=0 // pred_check
    _
  $region7: #{_lambda_.1} parent=0 // pred_check_branch
    %29 = sbr.rel (0) target = $region9
  $region8: #{_lambda_.1} parent=0 // pred_region
    _
  $region9: #{_lambda_.1} parent=0 // pred_fallthru
    _
  // Predicated region
  $region10: #{_lambda_.1} parent=0 // pred_check
    _
  $region11: #{_lambda_.1} parent=0 // pred_check_branch
    %31 = sbr.rel (0) target = $region13
  $region12: #{_lambda_.1} parent=0 // pred_region
    _
  $region13: #{_lambda_.1} parent=0 // pred_fallthru
    _
  // Predicated region
  $region14: #{_lambda_.1} parent=0 // pred_check
    _
  $region15: #{_lambda_.1} parent=0 // pred_check_branch
    %33 = sbr.rel (0) target = $region17
  $region16: #{_lambda_.1} parent=0 // pred_region
    _
  $region17: #{_lambda_.1} parent=0 // pred_fallthru
    _
  // Predicated region
  $region18: #{_lambda_.1} parent=0 // pred_check
    _
  $region19: #{_lambda_.1} parent=0 // pred_check_branch
    %35 = sbr.rel (0) target = $region21
  $region20: #{_lambda_.1} parent=0 // pred_region
    _
  $region21: #{_lambda_.1} parent=0 // pred_fallthru
    _
  // Predicated region
  $region22: #{_lambda_.1} parent=0 // pred_check
    _
  $region23: #{_lambda_.1} parent=0 // pred_check_branch
    %37 = sbr.rel (0) target = $region25
  $region24: #{_lambda_.1} parent=0 // pred_region
    _
  $region25: #{_lambda_.1} parent=0 // pred_fallthru
    _
  // Predicated region
  $region26: #{_lambda_.1} parent=0 // pred_check
    _
  $region27: #{_lambda_.1} parent=0 // pred_check_branch
    %39 = sbr.rel (0) target = $region29
  $region28: #{_lambda_.1} parent=0 // pred_region
    _
  $region29: #{_lambda_.1} parent=0 // pred_fallthru
    _
  // Predicated region
  $region30: #{_lambda_.1} parent=0 // pred_check
    _
  $region31: #{_lambda_.1} parent=0 // pred_check_branch
    %41 = sbr.rel (0) target = $region33
  $region32: #{_lambda_.1} parent=0 // pred_region
    _
  $region33: #{_lambda_.1} parent=0 // pred_fallthru
    _
  // Predicated region
  $region34: #{_lambda_.1} parent=0 // pred_check
    _
  $region35: #{_lambda_.1} parent=0 // pred_check_branch
    %43 = sbr.rel (0) target = $region37
  $region36: #{_lambda_.1} parent=0 // pred_region
    _
  $region37: #{_lambda_.1} parent=0 // pred_fallthru
    _
  // Predicated region
  $region38: #{_lambda_.1} parent=0 // pred_check
    _
  $region39: #{_lambda_.1} parent=0 // pred_check_branch
    %45 = sbr.rel (0) target = $region41
  $region40: #{_lambda_.1} parent=0 // pred_region
    _
  $region41: #{_lambda_.1} parent=0 // pred_fallthru
    _
  // Predicated region
  $region42: #{_lambda_.1} parent=0 // pred_check
    _
  $region43: #{_lambda_.1} parent=0 // pred_check_branch
    %47 = sbr.rel (0) target = $region45
  $region44: #{_lambda_.1} parent=0 // pred_region
    _
  $region45: #{_lambda_.1} parent=0 // pred_fallthru
    _
  // Predicated region
  $region46: #{_lambda_.1} parent=0 // pred_check
    _
  $region47: #{_lambda_.1} parent=0 // pred_check_branch
    %49 = sbr.rel (0) target = $region49
  $region48: #{_lambda_.1} parent=0 // pred_region
    _
  $region49: #{_lambda_.1} parent=0 // pred_fallthru
    _
  // Predicated region
  $region50: #{_lambda_.1} parent=0 // pred_check
    _
  $region51: #{_lambda_.1} parent=0 // pred_check_branch
    %51 = sbr.rel (0) target = $region53
  $region52: #{_lambda_.1} parent=0 // pred_region
    _
  $region53: #{_lambda_.1} parent=0 // pred_fallthru
    _
  // Predicated region
  $region54: #{_lambda_.1} parent=0 // pred_check
    _
  $region55: #{_lambda_.1} parent=0 // pred_check_branch
    %53 = sbr.rel (0) target = $region57
  $region56: #{_lambda_.1} parent=0 // pred_region
    _
  $region57: #{_lambda_.1} parent=0 // pred_fallthru
    _
  // Predicated region
  $region58: #{_lambda_.1} parent=0 // pred_check
    _
  $region59: #{_lambda_.1} parent=0 // pred_check_branch
    %55 = sbr.rel (0) target = $region61
  $region60: #{_lambda_.1} parent=0 // pred_region
    _
  $region61: #{_lambda_.1} parent=0 // pred_fallthru
    _
  // Predicated region
  $region62: #{_lambda_.1} parent=0 // pred_check
    _
  $region63: #{_lambda_.1} parent=0 // pred_check_branch
    %57 = sbr.rel (0) target = $region65
  $region64: #{_lambda_.1} parent=0 // pred_region
    _
  $region65: #{_lambda_.1} parent=0 // pred_fallthru
    _
  // Predicated region
  $region66: #{_lambda_.1} parent=0 // pred_check
    _
  $region67: #{_lambda_.1} parent=0 // pred_check_branch
    %59 = sbr.rel (0) target = $region69
  $region68: #{_lambda_.1} parent=0 // pred_region
    _
  $region69: #{_lambda_.1} parent=0 // pred_fallthru
    _
  %v61 = vld [vmem:[%s0] sm:$0xff]
  %v62 = vld [vmem:[%s0 + $0x8] sm:$0xff]
  %v63 = vld [vmem:[%s0 + $0x10] sm:$0xff]
  %v64 = vld [vmem:[%s0 + $0x18] sm:$0xff]
  %v65 = vld [vmem:[%s0 + $0x20] sm:$0xff]
  %v66 = vld [vmem:[%s0 + $0x28] sm:$0xff]
  %v67 = vld [vmem:[%s0 + $0x30] sm:$0xff]
  %v68 = vld [vmem:[%s0 + $0x38] sm:$0xff]
  %v69 = vld [vmem:[%s0 + $0x40] sm:$0xff]
  %v70 = vld [vmem:[%s3] sm:$0xf]
  %v71 = vld [vmem:[%s4] sm:$0xff]
  %v72 = vld [vmem:[%s4 + $0x8] sm:$0x11]
  %v73 = vld [vmem:[%s5] sm:$0xff]
  %v74 = vld [vmem:[%s5 + $0x8] sm:$0x3]
  %v75 = vld [vmem:[%s6] sm:$0xff]
  %v76 = vld [vmem:[%s6 + $0x8] sm:$0x3]
  %v77 = vld [vmem:[%s7] sm:$0xff]
  %v78 = vld [vmem:[%s7 + $0x8] sm:$0x3]
  %v79 = vpack.c.bf16 %v62, %v61
  %v80 = vpack.c.bf16 %v64, %v63
  %v81 = vpack.c.bf16 %v66, %v65
  %v82 = vpack.c.bf16 %v68, %v67
  %v83 = vpack.c.bf16 %v69, %v69
  %vm84 = vcmask 588800
  %v86 = vsel %vm84, %v70, 0
  %vm88 = vcmask 1043456
  %v90 = vsel %vm88, %v83, 0
  %92 = vmatprep.subr.bf16.mxu0 0
  %93 = vmatpush1.bf16.msra.mxu0 0
  %94 = vmatprep.subr.bf16.mxu0 0
  %95 = vmatpush1.bf16.msra.mxu0 0
  %96 = vmatprep.subr.bf16.mxu0 0
  %97 = vmatpush1.bf16.msra.mxu0 0
  %98 = vmatprep.subr.bf16.mxu0 0
  %99 = vmatpush1.bf16.msra.mxu0 %v90
  %100 = vmatprep.subr.bf16.mxu0 0
  %101 = vmatpush1.bf16.msra.mxu0 %v82
  %102 = vmatprep.subr.bf16.mxu0 0
  %103 = vmatpush1.bf16.msra.mxu0 %v81
  %104 = vmatprep.subr.bf16.mxu0 0
  %105 = vmatpush1.bf16.msra.mxu0 %v80
  %106 = vmatprep.subr.bf16.mxu0 0
  %107 = vmatpush1.bf16.msra.mxu0 %v79
  %108 = vmatprep.subr.bf16.mxu0 0
  %109 = vmatpush2.bf16.msra.mxu0 0
  %110 = vmatprep.subr.bf16.mxu0 0
  %111 = vmatpush2.bf16.msra.mxu0 0
  %112 = vmatprep.subr.bf16.mxu0 0
  %113 = vmatpush2.bf16.msra.mxu0 0
  %114 = vmatprep.subr.bf16.mxu0 0
  %115 = vmatpush2.bf16.msra.mxu0 0
  %116 = vmatprep.subr.bf16.mxu0 0
  %117 = vmatpush2.bf16.msra.mxu0 0
  %118 = vmatprep.subr.bf16.mxu0 0
  %119 = vmatpush2.bf16.msra.mxu0 0
  %120 = vmatprep.subr.bf16.mxu0 0
  %121 = vmatpush2.bf16.msra.mxu0 0
  %122 = vmatprep.subr.bf16.mxu0 0
  %123 = vmatpush2.bf16.msra.mxu0 0
  %124 = vmatprep.mubr.bf16.mxu0 0
  %125 = vmatmul.mubr.bf16.gmra.mxu0 %v86
  %v126 = vpop.f32.mrf.mxu0
  %v127 = vadd.f32 0.0, %v126
  %v128 = vpop.f32.mrf.mxu0
  %v129 = vpop.f32.mrf.mxu0
  %v130 = vpop.f32.mrf.mxu0
  %131 = vdwg.mxu0
  %132 = vrot.lane.b32.xlu0 %v127, 9
  %v133 = vpop.permute.xlu0 %132
  %v134 = vld [vmem:[%s2] sm:$0x1]
  %v136 = vlaneseq
  %v137 = vshrl.u32 %v136, 7
  %v138 = vsub.s32 0, %v137
  %v139 = vrot.slane %v134, %v138
  %v141 = vmul.f32 %v133, %v139
  %142 = vrot.lane.b32.xlu0 %v127, 8
  %v143 = vpop.permute.xlu0 %142
  %s144 = scalar_lea.vmem %s2, 1
  %v145 = vld [vmem:[%s144] sm:$0x1]
  %v147 = vlaneseq
  %v148 = vshrl.u32 %v147, 7
  %v149 = vsub.s32 0, %v148
  %v150 = vrot.slane %v145, %v149
  %v152 = vmul.f32 %v143, %v150
  %153 = vrot.lane.b32.xlu0 %v127, 7
  %v154 = vpop.permute.xlu0 %153
  %s155 = scalar_lea.vmem %s2, 2
  %v156 = vld [vmem:[%s155] sm:$0x1]
  %v158 = vlaneseq
  %v159 = vshrl.u32 %v158, 7
  %v160 = vsub.s32 0, %v159
  %v161 = vrot.slane %v156, %v160
  %v163 = vmul.f32 %v154, %v161
  %164 = vrot.lane.b32.xlu0 %v127, 1
  %v165 = vpop.permute.xlu0 %164
  %s166 = scalar_lea.vmem %s2, 3
  %v167 = vld [vmem:[%s166] sm:$0x1]
  %v169 = vlaneseq
  %v170 = vshrl.u32 %v169, 7
  %v171 = vsub.s32 0, %v170
  %v172 = vrot.slane %v167, %v171
  %v174 = vmul.f32 %v165, %v172
  %175 = vrot.lane.b32.xlu0 %v127, 127
  %v176 = vpop.permute.xlu0 %175
  %s177 = scalar_lea.vmem %s2, 5
  %v178 = vld [vmem:[%s177] sm:$0x1]
  %v180 = vlaneseq
  %v181 = vshrl.u32 %v180, 7
  %v182 = vsub.s32 0, %v181
  %v183 = vrot.slane %v178, %v182
  %v185 = vmul.f32 %v176, %v183
  %186 = vrot.lane.b32.xlu0 %v127, 121
  %v187 = vpop.permute.xlu0 %186
  %s188 = scalar_lea.vmem %s2, 6
  %v189 = vld [vmem:[%s188] sm:$0x1]
  %v191 = vlaneseq
  %v192 = vshrl.u32 %v191, 7
  %v193 = vsub.s32 0, %v192
  %v194 = vrot.slane %v189, %v193
  %v196 = vmul.f32 %v187, %v194
  %197 = vrot.lane.b32.xlu0 %v127, 120
  %v198 = vpop.permute.xlu0 %197
  %s199 = scalar_lea.vmem %s2, 7
  %v200 = vld [vmem:[%s199] sm:$0x1]
  %v202 = vlaneseq
  %v203 = vshrl.u32 %v202, 7
  %v204 = vsub.s32 0, %v203
  %v205 = vrot.slane %v200, %v204
  %v207 = vmul.f32 %v198, %v205
  %208 = vrot.lane.b32.xlu0 %v127, 119
  %v209 = vpop.permute.xlu0 %208
  %s210 = scalar_lea.vmem %s2, 8
  %v211 = vld [vmem:[%s210] sm:$0x1]
  %v213 = vlaneseq
  %v214 = vshrl.u32 %v213, 7
  %v215 = vsub.s32 0, %v214
  %v216 = vrot.slane %v211, %v215
  %v218 = vmul.f32 %v209, %v216
  %219 = vrot.lane.b32.xlu0 %v127, 18
  %v220 = vpop.permute.xlu0 %219
  %s221 = scalar_lea.vmem %s2, 9
  %v222 = vld [vmem:[%s221] sm:$0x1]
  %v224 = vlaneseq
  %v225 = vshrl.u32 %v224, 7
  %v226 = vsub.s32 0, %v225
  %v227 = vrot.slane %v222, %v226
  %v229 = vmul.f32 %v220, %v227
  %230 = vrot.lane.b32.xlu0 %v127, 16
  %v231 = vpop.permute.xlu0 %230
  %s232 = scalar_lea.vmem %s2, 10
  %v233 = vld [vmem:[%s232] sm:$0x1]
  %v235 = vlaneseq
  %v236 = vshrl.u32 %v235, 7
  %v237 = vsub.s32 0, %v236
  %v238 = vrot.slane %v233, %v237
  %v240 = vmul.f32 %v231, %v238
  %241 = vrot.lane.b32.xlu0 %v127, 14
  %v242 = vpop.permute.xlu0 %241
  %s243 = scalar_lea.vmem %s2, 11
  %v244 = vld [vmem:[%s243] sm:$0x1]
  %v246 = vlaneseq
  %v247 = vshrl.u32 %v246, 7
  %v248 = vsub.s32 0, %v247
  %v249 = vrot.slane %v244, %v248
  %v251 = vmul.f32 %v242, %v249
  %252 = vrot.lane.b32.xlu0 %v127, 2
  %v253 = vpop.permute.xlu0 %252
  %s254 = scalar_lea.vmem %s2, 12
  %v255 = vld [vmem:[%s254] sm:$0x1]
  %v257 = vlaneseq
  %v258 = vshrl.u32 %v257, 7
  %v259 = vsub.s32 0, %v258
  %v260 = vrot.slane %v255, %v259
  %v262 = vmul.f32 %v253, %v260
  %263 = vrot.lane.b32.xlu0 %v127, 126
  %v264 = vpop.permute.xlu0 %263
  %s265 = scalar_lea.vmem %s2, 14
  %v266 = vld [vmem:[%s265] sm:$0x1]
  %v268 = vlaneseq
  %v269 = vshrl.u32 %v268, 7
  %v270 = vsub.s32 0, %v269
  %v271 = vrot.slane %v266, %v270
  %v273 = vmul.f32 %v264, %v271
  %274 = vrot.lane.b32.xlu0 %v127, 114
  %v275 = vpop.permute.xlu0 %274
  %s276 = scalar_lea.vmem %s2, 15
  %v277 = vld [vmem:[%s276] sm:$0x1]
  %v279 = vlaneseq
  %v280 = vshrl.u32 %v279, 7
  %v281 = vsub.s32 0, %v280
  %v282 = vrot.slane %v277, %v281
  %v284 = vmul.f32 %v275, %v282
  %285 = vrot.lane.b32.xlu0 %v127, 112
  %v286 = vpop.permute.xlu0 %285
  %s287 = scalar_lea.vmem %s2, 16
  %v288 = vld [vmem:[%s287] sm:$0x1]
  %v290 = vlaneseq
  %v291 = vshrl.u32 %v290, 7
  %v292 = vsub.s32 0, %v291
  %v293 = vrot.slane %v288, %v292
  %v295 = vmul.f32 %v286, %v293
  %296 = vrot.lane.b32.xlu0 %v127, 110
  %v297 = vpop.permute.xlu0 %296
  %s298 = scalar_lea.vmem %s2, 17
  %v299 = vld [vmem:[%s298] sm:$0x1]
  %v301 = vlaneseq
  %v302 = vshrl.u32 %v301, 7
  %v303 = vsub.s32 0, %v302
  %v304 = vrot.slane %v299, %v303
  %v306 = vmul.f32 %v297, %v304
  %307 = vrot.lane.b32.xlu0 %v127, 36
  %v308 = vpop.permute.xlu0 %307
  %s309 = scalar_lea.vmem %s2, 18
  %v310 = vld [vmem:[%s309] sm:$0x1]
  %v312 = vlaneseq
  %v313 = vshrl.u32 %v312, 7
  %v314 = vsub.s32 0, %v313
  %v315 = vrot.slane %v310, %v314
  %v317 = vmul.f32 %v308, %v315
  %318 = vrot.lane.b32.xlu0 %v127, 32
  %v319 = vpop.permute.xlu0 %318
  %s320 = scalar_lea.vmem %s2, 19
  %v321 = vld [vmem:[%s320] sm:$0x1]
  %v323 = vlaneseq
  %v324 = vshrl.u32 %v323, 7
  %v325 = vsub.s32 0, %v324
  %v326 = vrot.slane %v321, %v325
  %v328 = vmul.f32 %v319, %v326
  %329 = vrot.lane.b32.xlu0 %v127, 28
  %v330 = vpop.permute.xlu0 %329
  %s331 = scalar_lea.vmem %s2, 20
  %v332 = vld [vmem:[%s331] sm:$0x1]
  %v334 = vlaneseq
  %v335 = vshrl.u32 %v334, 7
  %v336 = vsub.s32 0, %v335
  %v337 = vrot.slane %v332, %v336
  %v339 = vmul.f32 %v330, %v337
  %340 = vrot.lane.b32.xlu0 %v127, 4
  %v341 = vpop.permute.xlu0 %340
  %s342 = scalar_lea.vmem %s2, 21
  %v343 = vld [vmem:[%s342] sm:$0x1]
  %v345 = vlaneseq
  %v346 = vshrl.u32 %v345, 7
  %v347 = vsub.s32 0, %v346
  %v348 = vrot.slane %v343, %v347
  %v350 = vmul.f32 %v341, %v348
  %351 = vrot.lane.b32.xlu0 %v127, 124
  %v352 = vpop.permute.xlu0 %351
  %s353 = scalar_lea.vmem %s2, 23
  %v354 = vld [vmem:[%s353] sm:$0x1]
  %v356 = vlaneseq
  %v357 = vshrl.u32 %v356, 7
  %v358 = vsub.s32 0, %v357
  %v359 = vrot.slane %v354, %v358
  %v361 = vmul.f32 %v352, %v359
  %362 = vrot.lane.b32.xlu0 %v127, 100
  %v363 = vpop.permute.xlu0 %362
  %s364 = scalar_lea.vmem %s2, 24
  %v365 = vld [vmem:[%s364] sm:$0x1]
  %v367 = vlaneseq
  %v368 = vshrl.u32 %v367, 7
  %v369 = vsub.s32 0, %v368
  %v370 = vrot.slane %v365, %v369
  %v372 = vmul.f32 %v363, %v370
  %373 = vrot.lane.b32.xlu0 %v127, 96
  %v374 = vpop.permute.xlu0 %373
  %s375 = scalar_lea.vmem %s2, 25
  %v376 = vld [vmem:[%s375] sm:$0x1]
  %v378 = vlaneseq
  %v379 = vshrl.u32 %v378, 7
  %v380 = vsub.s32 0, %v379
  %v381 = vrot.slane %v376, %v380
  %v383 = vmul.f32 %v374, %v381
  %384 = vrot.lane.b32.xlu0 %v127, 92
  %v385 = vpop.permute.xlu0 %384
  %s386 = scalar_lea.vmem %s2, 26
  %v387 = vld [vmem:[%s386] sm:$0x1]
  %v389 = vlaneseq
  %v390 = vshrl.u32 %v389, 7
  %v391 = vsub.s32 0, %v390
  %v392 = vrot.slane %v387, %v391
  %v394 = vmul.f32 %v385, %v392
  %v395 = vpack.c.bf16 %v152, %v141
  %v396 = vpack.c.bf16 %v174, %v163
  %v397 = vpack.c.bf16 %v185, %v127
  %v398 = vpack.c.bf16 %v207, %v196
  %v399 = vpack.c.bf16 %v229, %v218
  %v400 = vpack.c.bf16 %v251, %v240
  %v401 = vpack.c.bf16 %v127, %v262
  %v402 = vpack.c.bf16 %v284, %v273
  %v403 = vpack.c.bf16 %v306, %v295
  %v404 = vpack.c.bf16 %v328, %v317
  %v405 = vpack.c.bf16 %v350, %v339
  %v406 = vpack.c.bf16 %v361, %v127
  %v407 = vpack.c.bf16 %v383, %v372
  %v408 = vpack.c.bf16 %v127, %v394
  %v409 = vpack.c.bf16 %v127, %v127
  %v412 = vunpack.c.l.b16 %v71
  %v413 = vunpack.c.h.b16 %v71
  %v414 = vunpack.c.l.b16 %v72
  %v415 = vunpack.c.h.b16 %v72
  %v416 = vpack.c.b16 %v414, %v412
  %v417 = vpack.c.b16 %v415, %v413
  %vm419 = vcmask 850944
  %v421 = vsel %vm419, %v417, 0
  %v424 = vsel %vm88, %v409, 0
  %426 = vmatprep.subr.bf16.mxu0 0
  %427 = vmatpush1.bf16.msra.mxu0 %v402
  %428 = vmatprep.subr.bf16.mxu0 0
  %429 = vmatpush1.bf16.msra.mxu0 %v401
  %430 = vmatprep.subr.bf16.mxu0 0
  %431 = vmatpush1.bf16.msra.mxu0 %v400
  %432 = vmatprep.subr.bf16.mxu0 0
  %433 = vmatpush1.bf16.msra.mxu0 %v399
  %434 = vmatprep.subr.bf16.mxu0 0
  %435 = vmatpush1.bf16.msra.mxu0 %v398
  %436 = vmatprep.subr.bf16.mxu0 0
  %437 = vmatpush1.bf16.msra.mxu0 %v397
  %438 = vmatprep.subr.bf16.mxu0 0
  %439 = vmatpush1.bf16.msra.mxu0 %v396
  %440 = vmatprep.subr.bf16.mxu0 0
  %441 = vmatpush1.bf16.msra.mxu0 %v395
  %442 = vmatprep.subr.bf16.mxu0 0
  %443 = vmatpush2.bf16.msra.mxu0 0
  %444 = vmatprep.subr.bf16.mxu0 0
  %445 = vmatpush2.bf16.msra.mxu0 %v424
  %446 = vmatprep.subr.bf16.mxu0 0
  %447 = vmatpush2.bf16.msra.mxu0 %v408
  %448 = vmatprep.subr.bf16.mxu0 0
  %449 = vmatpush2.bf16.msra.mxu0 %v407
  %450 = vmatprep.subr.bf16.mxu0 0
  %451 = vmatpush2.bf16.msra.mxu0 %v406
  %452 = vmatprep.subr.bf16.mxu0 0
  %453 = vmatpush2.bf16.msra.mxu0 %v405
  %454 = vmatprep.subr.bf16.mxu0 0
  %455 = vmatpush2.bf16.msra.mxu0 %v404
  %456 = vmatprep.subr.bf16.mxu0 0
  %457 = vmatpush2.bf16.msra.mxu0 %v403
  %458 = vmatprep.mubr.bf16.mxu0 %v421
  %459 = vmatmul.mubr.bf16.gmra.mxu0 %v416
  %v460 = vpop.f32.mrf.mxu0
  %v461 = vadd.f32 0.0, %v460
  %v462 = vpop.f32.mrf.mxu0
  %v463 = vpop.f32.mrf.mxu0
  %v464 = vadd.f32 0.0, %v463
  %v465 = vpop.f32.mrf.mxu0
  %466 = vdwg.mxu0
  %468 = vset.pattern.permute.xlu0 0
  %469 = vperm.xlu0 %468, %v73
  %v470 = vpop.permute.xlu0 %469
  %473 = vset.pattern.permute.xlu0 0
  %474 = vperm.xlu0 %473, %v74
  %v475 = vpop.permute.xlu0 %474
  %v477 = vmul.f32 %v461, %v470
  %v478 = vmul.f32 %v464, %v475
  %480 = vset.pattern.permute.xlu0 0
  %481 = vperm.xlu0 %480, %v75
  %v482 = vpop.permute.xlu0 %481
  %485 = vset.pattern.permute.xlu0 0
  %486 = vperm.xlu0 %485, %v76
  %v487 = vpop.permute.xlu0 %486
  %v489 = vadd.f32 %v477, %v482
  %v490 = vadd.f32 %v478, %v487
  %vm491 = vcmp.ge.f32.partialorder %v489, 0.0
  %vm492 = vcmp.ge.f32.partialorder %v490, 0.0
  %494 = vset.pattern.permute.xlu0 0
  %495 = vperm.xlu0 %494, %v77
  %v496 = vpop.permute.xlu0 %495
  %499 = vset.pattern.permute.xlu0 0
  %500 = vperm.xlu0 %499, %v78
  %v501 = vpop.permute.xlu0 %500
  %v503 = vmul.f32 %v496, %v489
  %v504 = vmul.f32 %v501, %v490
  %v505 = vsel %vm491, %v489, %v503
  %v506 = vsel %vm492, %v490, %v504
  %v507 = vld [vmem:[%s8] sm:$0xf]
  %v508 = vld [vmem:[%s9] sm:$0xff]
  %v509 = vld [vmem:[%s9 + $0x8] sm:$0x11]
  %v510 = vld [vmem:[%s10] sm:$0xff]
  %v511 = vld [vmem:[%s10 + $0x8] sm:$0x3]
  %v512 = vld [vmem:[%s11] sm:$0xff]
  %v513 = vld [vmem:[%s11 + $0x8] sm:$0x3]
  %v514 = vld [vmem:[%s12] sm:$0xff]
  %v515 = vld [vmem:[%s12 + $0x8] sm:$0x3]
  %v516 = vpack.c.bf16 %v506, %v505
  %vm517 = vcmask 80896
  %v519 = vsel %vm517, %v507, 0
  %vm521 = vcmask 1044480
  %v523 = vsel %vm521, %v516, 0
  %525 = vmatprep.subr.bf16.mxu0 0
  %526 = vmatpush1.bf16.msra.mxu0 0
  %527 = vmatprep.subr.bf16.mxu0 0
  %528 = vmatpush1.bf16.msra.mxu0 0
  %529 = vmatprep.subr.bf16.mxu0 0
  %530 = vmatpush1.bf16.msra.mxu0 0
  %531 = vmatprep.subr.bf16.mxu0 0
  %532 = vmatpush1.bf16.msra.mxu0 0
  %533 = vmatprep.subr.bf16.mxu0 0
  %534 = vmatpush1.bf16.msra.mxu0 0
  %535 = vmatprep.subr.bf16.mxu0 0
  %536 = vmatpush1.bf16.msra.mxu0 0
  %537 = vmatprep.subr.bf16.mxu0 0
  %538 = vmatpush1.bf16.msra.mxu0 0
  %539 = vmatprep.subr.bf16.mxu0 0
  %540 = vmatpush1.bf16.msra.mxu0 %v523
  %541 = vmatprep.subr.bf16.mxu0 0
  %542 = vmatpush2.bf16.msra.mxu0 0
  %543 = vmatprep.subr.bf16.mxu0 0
  %544 = vmatpush2.bf16.msra.mxu0 0
  %545 = vmatprep.subr.bf16.mxu0 0
  %546 = vmatpush2.bf16.msra.mxu0 0
  %547 = vmatprep.subr.bf16.mxu0 0
  %548 = vmatpush2.bf16.msra.mxu0 0
  %549 = vmatprep.subr.bf16.mxu0 0
  %550 = vmatpush2.bf16.msra.mxu0 0
  %551 = vmatprep.subr.bf16.mxu0 0
  %552 = vmatpush2.bf16.msra.mxu0 0
  %553 = vmatprep.subr.bf16.mxu0 0
  %554 = vmatpush2.bf16.msra.mxu0 0
  %555 = vmatprep.subr.bf16.mxu0 0
  %556 = vmatpush2.bf16.msra.mxu0 0
  %557 = vmatprep.mubr.bf16.mxu0 0
  %558 = vmatmul.mubr.bf16.gmra.mxu0 %v519
  %v559 = vpop.f32.mrf.mxu0
  %v560 = vadd.f32 0.0, %v559
  %v561 = vpop.f32.mrf.mxu0
  %v562 = vpop.f32.mrf.mxu0
  %v563 = vpop.f32.mrf.mxu0
  %564 = vdwg.mxu0
  %565 = vrot.lane.b32.xlu0 %v560, 9
  %v566 = vpop.permute.xlu0 %565
  %v567 = vmul.f32 %v566, %v139
  %568 = vrot.lane.b32.xlu0 %v560, 8
  %v569 = vpop.permute.xlu0 %568
  %v570 = vmul.f32 %v569, %v150
  %571 = vrot.lane.b32.xlu0 %v560, 7
  %v572 = vpop.permute.xlu0 %571
  %v573 = vmul.f32 %v572, %v161
  %574 = vrot.lane.b32.xlu0 %v560, 1
  %v575 = vpop.permute.xlu0 %574
  %v576 = vmul.f32 %v575, %v172
  %577 = vrot.lane.b32.xlu0 %v560, 127
  %v578 = vpop.permute.xlu0 %577
  %v579 = vmul.f32 %v578, %v183
  %580 = vrot.lane.b32.xlu0 %v560, 121
  %v581 = vpop.permute.xlu0 %580
  %v582 = vmul.f32 %v581, %v194
  %583 = vrot.lane.b32.xlu0 %v560, 120
  %v584 = vpop.permute.xlu0 %583
  %v585 = vmul.f32 %v584, %v205
  %586 = vrot.lane.b32.xlu0 %v560, 119
  %v587 = vpop.permute.xlu0 %586
  %v588 = vmul.f32 %v587, %v216
  %589 = vrot.lane.b32.xlu0 %v560, 18
  %v590 = vpop.permute.xlu0 %589
  %v591 = vmul.f32 %v590, %v227
  %592 = vrot.lane.b32.xlu0 %v560, 16
  %v593 = vpop.permute.xlu0 %592
  %v594 = vmul.f32 %v593, %v238
  %595 = vrot.lane.b32.xlu0 %v560, 14
  %v596 = vpop.permute.xlu0 %595
  %v597 = vmul.f32 %v596, %v249
  %598 = vrot.lane.b32.xlu0 %v560, 2
  %v599 = vpop.permute.xlu0 %598
  %v600 = vmul.f32 %v599, %v260
  %601 = vrot.lane.b32.xlu0 %v560, 126
  %v602 = vpop.permute.xlu0 %601
  %v603 = vmul.f32 %v602, %v271
  %604 = vrot.lane.b32.xlu0 %v560, 114
  %v605 = vpop.permute.xlu0 %604
  %v606 = vmul.f32 %v605, %v282
  %607 = vrot.lane.b32.xlu0 %v560, 112
  %v608 = vpop.permute.xlu0 %607
  %v609 = vmul.f32 %v608, %v293
  %610 = vrot.lane.b32.xlu0 %v560, 110
  %v611 = vpop.permute.xlu0 %610
  %v612 = vmul.f32 %v611, %v304
  %613 = vrot.lane.b32.xlu0 %v560, 36
  %v614 = vpop.permute.xlu0 %613
  %v615 = vmul.f32 %v614, %v315
  %616 = vrot.lane.b32.xlu0 %v560, 32
  %v617 = vpop.permute.xlu0 %616
  %v618 = vmul.f32 %v617, %v326
  %619 = vrot.lane.b32.xlu0 %v560, 28
  %v620 = vpop.permute.xlu0 %619
  %v621 = vmul.f32 %v620, %v337
  %622 = vrot.lane.b32.xlu0 %v560, 4
  %v623 = vpop.permute.xlu0 %622
  %v624 = vmul.f32 %v623, %v348
  %625 = vrot.lane.b32.xlu0 %v560, 124
  %v626 = vpop.permute.xlu0 %625
  %v627 = vmul.f32 %v626, %v359
  %628 = vrot.lane.b32.xlu0 %v560, 100
  %v629 = vpop.permute.xlu0 %628
  %v630 = vmul.f32 %v629, %v370
  %631 = vrot.lane.b32.xlu0 %v560, 96
  %v632 = vpop.permute.xlu0 %631
  %v633 = vmul.f32 %v632, %v381
  %634 = vrot.lane.b32.xlu0 %v560, 92
  %v635 = vpop.permute.xlu0 %634
  %v636 = vmul.f32 %v635, %v392
  %v637 = vpack.c.bf16 %v570, %v567
  %v638 = vpack.c.bf16 %v576, %v573
  %v639 = vpack.c.bf16 %v579, %v560
  %v640 = vpack.c.bf16 %v585, %v582
  %v641 = vpack.c.bf16 %v591, %v588
  %v642 = vpack.c.bf16 %v597, %v594
  %v643 = vpack.c.bf16 %v560, %v600
  %v644 = vpack.c.bf16 %v606, %v603
  %v645 = vpack.c.bf16 %v612, %v609
  %v646 = vpack.c.bf16 %v618, %v615
  %v647 = vpack.c.bf16 %v624, %v621
  %v648 = vpack.c.bf16 %v627, %v560
  %v649 = vpack.c.bf16 %v633, %v630
  %v650 = vpack.c.bf16 %v560, %v636
  %v651 = vpack.c.bf16 %v560, %v560
  %v654 = vunpack.c.l.b16 %v508
  %v655 = vunpack.c.h.b16 %v508
  %v656 = vunpack.c.l.b16 %v509
  %v657 = vunpack.c.h.b16 %v509
  %v658 = vpack.c.b16 %v656, %v654
  %v659 = vpack.c.b16 %v657, %v655
  %v662 = vsel %vm419, %v659, 0
  %v665 = vsel %vm88, %v651, 0
  %667 = vmatprep.subr.bf16.mxu0 0
  %668 = vmatpush1.bf16.msra.mxu0 %v644
  %669 = vmatprep.subr.bf16.mxu0 0
  %670 = vmatpush1.bf16.msra.mxu0 %v643
  %671 = vmatprep.subr.bf16.mxu0 0
  %672 = vmatpush1.bf16.msra.mxu0 %v642
  %673 = vmatprep.subr.bf16.mxu0 0
  %674 = vmatpush1.bf16.msra.mxu0 %v641
  %675 = vmatprep.subr.bf16.mxu0 0
  %676 = vmatpush1.bf16.msra.mxu0 %v640
  %677 = vmatprep.subr.bf16.mxu0 0
  %678 = vmatpush1.bf16.msra.mxu0 %v639
  %679 = vmatprep.subr.bf16.mxu0 0
  %680 = vmatpush1.bf16.msra.mxu0 %v638
  %681 = vmatprep.subr.bf16.mxu0 0
  %682 = vmatpush1.bf16.msra.mxu0 %v637
  %683 = vmatprep.subr.bf16.mxu0 0
  %684 = vmatpush2.bf16.msra.mxu0 0
  %685 = vmatprep.subr.bf16.mxu0 0
  %686 = vmatpush2.bf16.msra.mxu0 %v665
  %687 = vmatprep.subr.bf16.mxu0 0
  %688 = vmatpush2.bf16.msra.mxu0 %v650
  %689 = vmatprep.subr.bf16.mxu0 0
  %690 = vmatpush2.bf16.msra.mxu0 %v649
  %691 = vmatprep.subr.bf16.mxu0 0
  %692 = vmatpush2.bf16.msra.mxu0 %v648
  %693 = vmatprep.subr.bf16.mxu0 0
  %694 = vmatpush2.bf16.msra.mxu0 %v647
  %695 = vmatprep.subr.bf16.mxu0 0
  %696 = vmatpush2.bf16.msra.mxu0 %v646
  %697 = vmatprep.subr.bf16.mxu0 0
  %698 = vmatpush2.bf16.msra.mxu0 %v645
  %699 = vmatprep.mubr.bf16.mxu0 %v662
  %700 = vmatmul.mubr.bf16.gmra.mxu0 %v658
  %v701 = vpop.f32.mrf.mxu0
  %v702 = vadd.f32 %v505, %v701
  %v703 = vpop.f32.mrf.mxu0
  %v704 = vpop.f32.mrf.mxu0
  %v705 = vadd.f32 %v506, %v704
  %v706 = vpop.f32.mrf.mxu0
  %707 = vdwg.mxu0
  %709 = vset.pattern.permute.xlu0 0
  %710 = vperm.xlu0 %709, %v510
  %v711 = vpop.permute.xlu0 %710
  %714 = vset.pattern.permute.xlu0 0
  %715 = vperm.xlu0 %714, %v511
  %v716 = vpop.permute.xlu0 %715
  %v718 = vmul.f32 %v702, %v711
  %v719 = vmul.f32 %v705, %v716
  %721 = vset.pattern.permute.xlu0 0
  %722 = vperm.xlu0 %721, %v512
  %v723 = vpop.permute.xlu0 %722
  %726 = vset.pattern.permute.xlu0 0
  %727 = vperm.xlu0 %726, %v513
  %v728 = vpop.permute.xlu0 %727
  %v730 = vadd.f32 %v718, %v723
  %v731 = vadd.f32 %v719, %v728
  %vm732 = vcmp.ge.f32.partialorder %v730, 0.0
  %vm733 = vcmp.ge.f32.partialorder %v731, 0.0
  %735 = vset.pattern.permute.xlu0 0
  %736 = vperm.xlu0 %735, %v514
  %v737 = vpop.permute.xlu0 %736
  %740 = vset.pattern.permute.xlu0 0
  %741 = vperm.xlu0 %740, %v515
  %v742 = vpop.permute.xlu0 %741
  %v744 = vmul.f32 %v737, %v730
  %v745 = vmul.f32 %v742, %v731
  %v746 = vsel %vm732, %v730, %v744
  %v747 = vsel %vm733, %v731, %v745
  %v748 = vld [vmem:[%s13] sm:$0xf]
  %v749 = vld [vmem:[%s1] sm:$0xff]
  %v750 = vld [vmem:[%s1 + $0x8] sm:$0xff]
  %v751 = vld [vmem:[%s1 + $0x10] sm:$0xff]
  %v752 = vld [vmem:[%s1 + $0x18] sm:$0xff]
  %v753 = vld [vmem:[%s1 + $0x20] sm:$0xf]
  %vm754 = vcmask 293888
  %v756 = vsel %vm754, %v748, 0
  %v759 = vsel %vm88, %v753, 0
  %761 = vmatprep.subr.mxu0 0.0
  %762 = vmatpush1.msra.mxu0 0.0
  %763 = vmatprep.subr.mxu0 0.0
  %764 = vmatpush1.msra.mxu0 0.0
  %765 = vmatprep.subr.mxu0 0.0
  %766 = vmatpush1.msra.mxu0 0.0
  %767 = vmatprep.subr.mxu0 0.0
  %768 = vmatpush1.msra.mxu0 0.0
  %769 = vmatprep.subr.mxu0 0.0
  %770 = vmatpush1.msra.mxu0 0.0
  %771 = vmatprep.subr.mxu0 0.0
  %772 = vmatpush1.msra.mxu0 0.0
  %773 = vmatprep.subr.mxu0 0.0
  %774 = vmatpush1.msra.mxu0 0.0
  %775 = vmatprep.subr.mxu0 0.0
  %776 = vmatpush1.msra.mxu0 0.0
  %777 = vmatprep.subr.mxu0 0.0
  %778 = vmatpush1.msra.mxu0 0.0
  %779 = vmatprep.subr.mxu0 0.0
  %780 = vmatpush1.msra.mxu0 0.0
  %781 = vmatprep.subr.mxu0 0.0
  %782 = vmatpush1.msra.mxu0 0.0
  %783 = vmatprep.subr.mxu0 0.0
  %784 = vmatpush1.msra.mxu0 %v759
  %785 = vmatprep.subr.mxu0 0.0
  %786 = vmatpush1.msra.mxu0 %v752
  %787 = vmatprep.subr.mxu0 0.0
  %788 = vmatpush1.msra.mxu0 %v751
  %789 = vmatprep.subr.mxu0 0.0
  %790 = vmatpush1.msra.mxu0 %v750
  %791 = vmatprep.subr.mxu0 0.0
  %792 = vmatpush1.msra.mxu0 %v749
  %793 = vmatprep.subr.mxu0 0.0
  %794 = vmatpush2.msra.mxu0 0.0
  %795 = vmatprep.subr.mxu0 0.0
  %796 = vmatpush2.msra.mxu0 0.0
  %797 = vmatprep.subr.mxu0 0.0
  %798 = vmatpush2.msra.mxu0 0.0
  %799 = vmatprep.subr.mxu0 0.0
  %800 = vmatpush2.msra.mxu0 0.0
  %801 = vmatprep.subr.mxu0 0.0
  %802 = vmatpush2.msra.mxu0 0.0
  %803 = vmatprep.subr.mxu0 0.0
  %804 = vmatpush2.msra.mxu0 0.0
  %805 = vmatprep.subr.mxu0 0.0
  %806 = vmatpush2.msra.mxu0 0.0
  %807 = vmatprep.subr.mxu0 0.0
  %808 = vmatpush2.msra.mxu0 0.0
  %809 = vmatprep.subr.mxu0 0.0
  %810 = vmatpush2.msra.mxu0 0.0
  %811 = vmatprep.subr.mxu0 0.0
  %812 = vmatpush2.msra.mxu0 0.0
  %813 = vmatprep.subr.mxu0 0.0
  %814 = vmatpush2.msra.mxu0 0.0
  %815 = vmatprep.subr.mxu0 0.0
  %816 = vmatpush2.msra.mxu0 0.0
  %817 = vmatprep.subr.mxu0 0.0
  %818 = vmatpush2.msra.mxu0 0.0
  %819 = vmatprep.subr.mxu0 0.0
  %820 = vmatpush2.msra.mxu0 0.0
  %821 = vmatprep.subr.mxu0 0.0
  %822 = vmatpush2.msra.mxu0 0.0
  %823 = vmatprep.subr.mxu0 0.0
  %824 = vmatpush2.msra.mxu0 0.0
  %825 = vmatprep.mubr.f32.mxu0 0.0
  %826 = vmatmul.mubr.f32.gmra.mxu0 %v756
  %v827 = vpop.f32.mrf.mxu0
  %v828 = vadd.f32 0.0, %v827
  %v829 = vpop.f32.mrf.mxu0
  %830 = vdwg.mxu0
  %831 = vst [vmem:[%s20] sm:$0xf] %v828
  %v832 = vld [vmem:[%s14] sm:$0xff]
  %v833 = vld [vmem:[%s14 + $0x8] sm:$0x3]
  %v834 = vld [vmem:[%s15] sm:$0xff]
  %v835 = vld [vmem:[%s15 + $0x8] sm:$0x3]
  %v836 = vld [vmem:[%s16] sm:$0xff]
  %v837 = vld [vmem:[%s16 + $0x8] sm:$0x3]
  %839 = vset.pattern.permute.xlu0 0
  %840 = vperm.xlu0 %839, %v832
  %v841 = vpop.permute.xlu0 %840
  %844 = vset.pattern.permute.xlu0 0
  %845 = vperm.xlu0 %844, %v833
  %v846 = vpop.permute.xlu0 %845
  %v848 = vmul.f32 %v746, %v841
  %v849 = vmul.f32 %v747, %v846
  %851 = vset.pattern.permute.xlu0 0
  %852 = vperm.xlu0 %851, %v834
  %v853 = vpop.permute.xlu0 %852
  %856 = vset.pattern.permute.xlu0 0
  %857 = vperm.xlu0 %856, %v835
  %v858 = vpop.permute.xlu0 %857
  %v860 = vadd.f32 %v848, %v853
  %v861 = vadd.f32 %v849, %v858
  %vm862 = vcmp.ge.f32.partialorder %v860, 0.0
  %vm863 = vcmp.ge.f32.partialorder %v861, 0.0
  %865 = vset.pattern.permute.xlu0 0
  %866 = vperm.xlu0 %865, %v836
  %v867 = vpop.permute.xlu0 %866
  %870 = vset.pattern.permute.xlu0 0
  %871 = vperm.xlu0 %870, %v837
  %v872 = vpop.permute.xlu0 %871
  %v874 = vmul.f32 %v867, %v860
  %v875 = vmul.f32 %v872, %v861
  %v876 = vsel %vm862, %v860, %v874
  %v877 = vsel %vm863, %v861, %v875
  %878 = vst [vmem:[%s17] sm:$0xff] %v876
  %879 = vst [vmem:[%s17 + $0x8] sm:$0x3] %v877
  %v880 = vld [vmem:[%s14 + $0xa] sm:$0xff]
  %v881 = vld [vmem:[%s14 + $0x12] sm:$0x3]
  %v882 = vld [vmem:[%s15 + $0xa] sm:$0xff]
  %v883 = vld [vmem:[%s15 + $0x12] sm:$0x3]
  %v884 = vld [vmem:[%s16 + $0xa] sm:$0xff]
  %v885 = vld [vmem:[%s16 + $0x12] sm:$0x3]
  %887 = vset.pattern.permute.xlu0 0
  %888 = vperm.xlu0 %887, %v880
  %v889 = vpop.permute.xlu0 %888
  %892 = vset.pattern.permute.xlu0 0
  %893 = vperm.xlu0 %892, %v881
  %v894 = vpop.permute.xlu0 %893
  %v896 = vmul.f32 %v505, %v889
  %v897 = vmul.f32 %v506, %v894
  %899 = vset.pattern.permute.xlu0 0
  %900 = vperm.xlu0 %899, %v882
  %v901 = vpop.permute.xlu0 %900
  %904 = vset.pattern.permute.xlu0 0
  %905 = vperm.xlu0 %904, %v883
  %v906 = vpop.permute.xlu0 %905
  %v908 = vadd.f32 %v896, %v901
  %v909 = vadd.f32 %v897, %v906
  %vm910 = vcmp.ge.f32.partialorder %v908, 0.0
  %vm911 = vcmp.ge.f32.partialorder %v909, 0.0
  %913 = vset.pattern.permute.xlu0 0
  %914 = vperm.xlu0 %913, %v884
  %v915 = vpop.permute.xlu0 %914
  %918 = vset.pattern.permute.xlu0 0
  %919 = vperm.xlu0 %918, %v885
  %v920 = vpop.permute.xlu0 %919
  %v922 = vmul.f32 %v915, %v908
  %v923 = vmul.f32 %v920, %v909
  %v924 = vsel %vm910, %v908, %v922
  %v925 = vsel %vm911, %v909, %v923
  %926 = vst [vmem:[%s18] sm:$0xff] %v924
  %927 = vst [vmem:[%s18 + $0x8] sm:$0x3] %v925
  %v928 = vld [vmem:[%s14 + $0x14] sm:$0xf]
  %v929 = vld [vmem:[%s15 + $0x14] sm:$0xf]
  %v930 = vld [vmem:[%s16 + $0x14] sm:$0xf]
  %932 = vset.pattern.permute.xlu0 0
  %933 = vperm.xlu0 %932, %v928
  %v934 = vpop.permute.xlu0 %933
  %v936 = vmul.f32 %v828, %v934
  %938 = vset.pattern.permute.xlu0 0
  %939 = vperm.xlu0 %938, %v929
  %v940 = vpop.permute.xlu0 %939
  %v942 = vadd.f32 %v936, %v940
  %vm943 = vcmp.ge.f32.partialorder %v942, 0.0
  %945 = vset.pattern.permute.xlu0 0
  %946 = vperm.xlu0 %945, %v930
  %v947 = vpop.permute.xlu0 %946
  %v949 = vmul.f32 %v947, %v942
  %v950 = vsel %vm943, %v942, %v949
  %951 = vst [vmem:[%s19] sm:$0xf] %v950
  // Predicated region
  $region70: #{_lambda_.1} parent=0 // pred_check
    _
  $region71: #{_lambda_.1} parent=0 // pred_check_branch
    %953 = sbr.rel (0) target = $region73
  $region72: #{_lambda_.1} parent=0 // pred_region
    _
  $region73: #{_lambda_.1} parent=0 // pred_fallthru
    _
  // Predicated region
  $region74: #{_lambda_.1} parent=0 // pred_check
    _
  $region75: #{_lambda_.1} parent=0 // pred_check_branch
    %955 = sbr.rel (0) target = $region77
  $region76: #{_lambda_.1} parent=0 // pred_region
    _
  $region77: #{_lambda_.1} parent=0 // pred_fallthru
    _
  // Predicated region
  $region78: #{_lambda_.1} parent=0 // pred_check
    _
  $region79: #{_lambda_.1} parent=0 // pred_check_branch
    %957 = sbr.rel (0) target = $region81
  $region80: #{_lambda_.1} parent=0 // pred_region
    _
  $region81: #{_lambda_.1} parent=0 // pred_fallthru
    _
  // Predicated region
  $region82: #{_lambda_.1} parent=0 // pred_check
    _
  $region83: #{_lambda_.1} parent=0 // pred_check_branch
    %959 = sbr.rel (0) target = $region85
  $region84: #{_lambda_.1} parent=0 // pred_region
    _
  $region85: #{_lambda_.1} parent=0 // pred_fallthru
    _
  // Predicated region
  $region86: #{_lambda_.1} parent=0 // pred_check
    _
  $region87: #{_lambda_.1} parent=0 // pred_check_branch
    %961 = sbr.rel (0) target = $region89
  $region88: #{_lambda_.1} parent=0 // pred_region
    _
  $region89: #{_lambda_.1} parent=0 // pred_fallthru
    _
  // Predicated region
  $region90: #{_lambda_.1} parent=0 // pred_check
    _
  $region91: #{_lambda_.1} parent=0 // pred_check_branch
    %963 = sbr.rel (0) target = $region93
  $region92: #{_lambda_.1} parent=0 // pred_region
    _
  $region93: #{_lambda_.1} parent=0 // pred_fallthru
    _
  // Predicated region
  $region94: #{_lambda_.1} parent=0 // pred_check
    _
  $region95: #{_lambda_.1} parent=0 // pred_check_branch
    %965 = sbr.rel (0) target = $region97
  $region96: #{_lambda_.1} parent=0 // pred_region
    _
  $region97: #{_lambda_.1} parent=0 // pred_fallthru
    _
  // Predicated region
  $region98: #{_lambda_.1} parent=0 // pred_check
    _
  $region99: #{_lambda_.1} parent=0 // pred_check_branch
    %967 = sbr.rel (0) target = $region101
  $region100: #{_lambda_.1} parent=0 // pred_region
    _
  $region101: #{_lambda_.1} parent=0 // pred_fallthru
    _

</llo_original>
